<compile_context>
chip_gen: v7x
topology: tpu7x:2x2x1
jax: 0.10.0
libtpu: 0.0.40
codegen_flags: <defaults>
</compile_context>

<pallas_src>
import jax
import jax.numpy as jnp
from jax.experimental import pallas as pl
from jax.experimental.pallas import tpu as pltpu

NODE_EMBED_DIM = 128
HIDDEN_DIM = 128


def _decoder_kernel(nodes_ref, mask_ref,
                    w1_ref, b1_ref, w2_ref, b2_ref, w3_ref, b3_ref,
                    mean_ref, std_ref, out_ref):
    # In-register cast of the node tile (no-op if the caller already feeds
    # bf16 nodes).  All matmuls use bf16 operands with f32 MXU accumulation.
    x = nodes_ref[...].astype(jnp.bfloat16)                              # (tn, 128)

    # Linear 1 (+f32 bias), then ReLU on packed bf16 (same values as
    # relu-then-cast since ReLU output is non-negative).
    h = jnp.dot(x, w1_ref[...], preferred_element_type=jnp.float32) + b1_ref[...]
    h = jnp.maximum(h.astype(jnp.bfloat16), 0)

    # Linear 2 (+f32 bias), then bf16 ReLU.
    h = jnp.dot(h, w2_ref[...], preferred_element_type=jnp.float32) + b2_ref[...]
    h = jnp.maximum(h.astype(jnp.bfloat16), 0)

    # Output Linear, then the de-normalization in f32 (PyTorch order):
    #   acc = acc_mean + (h @ w3 + b3) * acc_std
    acc = jnp.dot(h, w3_ref[...], preferred_element_type=jnp.float32) + b3_ref[...]
    acc = mean_ref[...] + acc * std_ref[...]

    # Per-node mask, broadcast over the physical dim.
    out_ref[...] = acc * mask_ref[...]                                   # (tn, P) f32


def decoder_forward(nodes, node_mask, params, *, tile_n=2048, vmem_limit_bytes=None):
    """nodes: (N, 128) f32/bf16, node_mask: (N,) -> (N, physical_dim) f32."""
    N, D = nodes.shape
    assert D == NODE_EMBED_DIM
    w1, b1, w2, b2, w3, b3, acc_mean, acc_std = params
    P = w3.shape[1]

    # Tiny, once-per-call operand preparation (no full-node-array passes).
    w1b = w1.astype(jnp.bfloat16)
    w2b = w2.astype(jnp.bfloat16)
    w3b = w3.astype(jnp.bfloat16)
    b1f = b1.astype(jnp.float32).reshape(1, HIDDEN_DIM)
    b2f = b2.astype(jnp.float32).reshape(1, HIDDEN_DIM)
    b3f = b3.astype(jnp.float32).reshape(1, P)
    meanf = acc_mean.astype(jnp.float32).reshape(1, P)
    stdf = acc_std.astype(jnp.float32).reshape(1, P)
    mask2d = node_mask.reshape(N, 1).astype(jnp.float32)   # 4 B/node, ~1% of stream

    # --- Tile sizing --------------------------------------------------------
    # Large tiles amortize per-step overhead; clamp to the 8-sublane-rounded
    # problem size, and prefer an even number of grid steps so the "parallel"
    # axis splits evenly across a 2-TensorCore chip (v7x).
    max_rows = ((N + 7) // 8) * 8
    tile = max(8, min((int(tile_n) // 8) * 8, max_rows))
    num_tiles = pl.cdiv(N, tile)
    if num_tiles % 2 == 1 and N > 8:
        num_tiles += 1
        tile = max(8, ((pl.cdiv(N, num_tiles) + 7) // 8) * 8)
        num_tiles = pl.cdiv(N, tile)

    # --- VMEM budget (lane-padded, double-buffered) --------------------------
    # nodes (tile, 128) in the input dtype; mask (tile, 1) and out (tile, P)
    # both lane-pad to (tile, 128) f32 in VMEM; plus f32/bf16 intermediates
    # and ~0.2 MiB of resident weights.
    node_bytes = jnp.dtype(nodes.dtype).itemsize
    per_row = D * node_bytes + 128 * 4 + 128 * 4          # nodes + mask + out
    vmem_est = 2 * tile * per_row + 3 * tile * HIDDEN_DIM * 4 + (1 << 20)
    if vmem_limit_bytes is None:
        # 32 MiB floor (default scoped limit), 64 MiB ceiling (v7x physical).
        vmem_limit_bytes = max(32 << 20, min(64 << 20, int(vmem_est * 5 // 4)))

    const = lambda i: (0, 0)

    out = pl.pallas_call(
        _decoder_kernel,
        out_shape=jax.ShapeDtypeStruct((N, P), jnp.float32),
        grid_spec=pltpu.PrefetchScalarGridSpec(
            num_scalar_prefetch=0,
            grid=(num_tiles,),
            in_specs=[
                pl.BlockSpec((tile, D), lambda i: (i, 0)),      # nodes tile
                pl.BlockSpec((tile, 1), lambda i: (i, 0)),      # mask tile
                pl.BlockSpec((D, HIDDEN_DIM), const),           # w1 (bf16)
                pl.BlockSpec((1, HIDDEN_DIM), const),           # b1 (f32)
                pl.BlockSpec((HIDDEN_DIM, HIDDEN_DIM), const),  # w2 (bf16)
                pl.BlockSpec((1, HIDDEN_DIM), const),           # b2 (f32)
                pl.BlockSpec((HIDDEN_DIM, P), const),           # w3 (bf16)
                pl.BlockSpec((1, P), const),                    # b3 (f32)
                pl.BlockSpec((1, P), const),                    # acc_mean (f32)
                pl.BlockSpec((1, P), const),                    # acc_std (f32)
            ],
            out_specs=pl.BlockSpec((tile, P), lambda i: (i, 0)),
        ),
        compiler_params=pltpu.CompilerParams(
            dimension_semantics=("parallel",),
            vmem_limit_bytes=int(vmem_limit_bytes)),
    )(nodes, mask2d, w1b, b1f, w2b, b2f, w3b, b3f, meanf, stdf)

    return out


def init_decoder_params(key, physical_dim, acc_mean, acc_std, cum_acc_noise_std):
    """Deterministic synthetic init (matches torch.nn.Linear shapes)."""
    ks = jax.random.split(key, 6)

    def linear(kw, kb, fan_in, fan_out):
        bound = 1.0 / jnp.sqrt(fan_in)
        w = jax.random.uniform(kw, (fan_in, fan_out), jnp.float32, -bound, bound)
        b = jax.random.uniform(kb, (1, fan_out), jnp.float32, -bound, bound)
        return w, b

    w1, b1 = linear(ks[0], ks[1], NODE_EMBED_DIM, HIDDEN_DIM)
    w2, b2 = linear(ks[2], ks[3], HIDDEN_DIM, HIDDEN_DIM)
    w3, b3 = linear(ks[4], ks[5], HIDDEN_DIM, physical_dim)

    acc_mean = jnp.asarray(acc_mean, jnp.float32).reshape(1, physical_dim)
    acc_std = jnp.asarray(acc_std, jnp.float32).reshape(1, physical_dim)
    # Decoder.__init__: std = sqrt(std^2 + cum_acc_noise_std^2 / 2)
    acc_std = jnp.sqrt(jnp.square(acc_std) + cum_acc_noise_std ** 2 / 2.0)

    return (w1, b1, w2, b2, w3, b3, acc_mean, acc_std)


def _reference_forward(nodes, node_mask, params, *, mirror_bf16=False):
    w1, b1, w2, b2, w3, b3, acc_mean, acc_std = params
    if mirror_bf16:
        # Mirror the kernel's bf16-operand / f32-accumulate arithmetic.
        c = lambda a: a.astype(jnp.bfloat16)
        h = jnp.maximum(jnp.dot(c(nodes), c(w1),
                                preferred_element_type=jnp.float32) + b1, 0.0)
        h = jnp.maximum(jnp.dot(c(h), c(w2),
                                preferred_element_type=jnp.float32) + b2, 0.0)
        acc = jnp.dot(c(h), c(w3), preferred_element_type=jnp.float32) + b3
        acc = acc_mean + acc * acc_std
    else:
        h = jax.nn.relu(nodes @ w1 + b1)
        h = jax.nn.relu(h @ w2 + b2)
        acc = acc_mean + (h @ w3 + b3) * acc_std
    return acc * node_mask[:, None]


if __name__ == "__main__":
    key = jax.random.PRNGKey(0)
    k_nodes, k_mask, k_params = jax.random.split(key, 3)

    physical_dim = 3
    N = 1000  # deliberately not a tile multiple -> exercises the ragged block

    nodes = jax.random.normal(k_nodes, (N, NODE_EMBED_DIM), jnp.float32)
    node_mask = (jax.random.uniform(k_mask, (N,)) > 0.2).astype(jnp.float32)

    params = init_decoder_params(
        k_params, physical_dim,
        acc_mean=[0.1, -0.2, 0.05],
        acc_std=[1.3, 0.7, 0.9],
        cum_acc_noise_std=0.003,
    )

    # Default tiling: tile derived from N, even grid (2 steps of ~504 rows).
    out = jax.block_until_ready(decoder_forward(nodes, node_mask, params))
    assert out.shape == (N, physical_dim)

    # Small tiles -> longer grid (4 steps), exercises the multi-tile path.
    out_small = jax.block_until_ready(
        decoder_forward(nodes, node_mask, params, tile_n=256))

    ref_bf16 = _reference_forward(nodes, node_mask, params, mirror_bf16=True)
    ref_f32 = _reference_forward(nodes, node_mask, params, mirror_bf16=False)

    assert jnp.allclose(out, ref_bf16, atol=2e-3, rtol=2e-2), \
        "mismatch vs bf16-mirrored reference"
    assert jnp.allclose(out, ref_f32, atol=5e-2, rtol=5e-2), \
        "mismatch vs f32 reference"
    assert jnp.allclose(out_small, out, atol=1e-5, rtol=1e-5), \
        "tile-size dependence"

    print("KERNEL_OK")
</pallas_src>

<mosaic_0001>
module attributes {stable_mosaic.version = 11 : i64} {
  func.func @_decoder_kernel(%arg0: i32, %arg1: memref<504x128xf32, #tpu.memory_space<vmem>>, %arg2: memref<504x1xf32, #tpu.memory_space<vmem>>, %arg3: memref<128x128xbf16, #tpu.memory_space<vmem>>, %arg4: memref<1x128xf32, #tpu.memory_space<vmem>>, %arg5: memref<128x128xbf16, #tpu.memory_space<vmem>>, %arg6: memref<1x128xf32, #tpu.memory_space<vmem>>, %arg7: memref<128x3xbf16, #tpu.memory_space<vmem>>, %arg8: memref<1x3xf32, #tpu.memory_space<vmem>>, %arg9: memref<1x3xf32, #tpu.memory_space<vmem>>, %arg10: memref<1x3xf32, #tpu.memory_space<vmem>>, %arg11: memref<504x3xf32, #tpu.memory_space<vmem>>) attributes {dimension_semantics = [#tpu.dimension_semantics<parallel>], iteration_bounds = array<i64: 2>, scalar_prefetch = 0 : i64, scratch_operands = 0 : i64, tpu.core_type = #tpu.core_type<tc>, window_params = [{transform_indices = @transform_0, window_bounds = array<i64: 504, 128>}, {transform_indices = @transform_1, window_bounds = array<i64: 504, 1>}, {pipeline_mode = #tpu.pipeline_mode<synchronous>, transform_indices = @transform_2, window_bounds = array<i64: 128, 128>}, {pipeline_mode = #tpu.pipeline_mode<synchronous>, transform_indices = @transform_3, window_bounds = array<i64: 1, 128>}, {pipeline_mode = #tpu.pipeline_mode<synchronous>, transform_indices = @transform_4, window_bounds = array<i64: 128, 128>}, {pipeline_mode = #tpu.pipeline_mode<synchronous>, transform_indices = @transform_5, window_bounds = array<i64: 1, 128>}, {pipeline_mode = #tpu.pipeline_mode<synchronous>, transform_indices = @transform_6, window_bounds = array<i64: 128, 3>}, {pipeline_mode = #tpu.pipeline_mode<synchronous>, transform_indices = @transform_7, window_bounds = array<i64: 1, 3>}, {pipeline_mode = #tpu.pipeline_mode<synchronous>, transform_indices = @transform_8, window_bounds = array<i64: 1, 3>}, {pipeline_mode = #tpu.pipeline_mode<synchronous>, transform_indices = @transform_9, window_bounds = array<i64: 1, 3>}, {transform_indices = @transform_10, window_bounds = array<i64: 504, 3>}]} {
    %c0 = arith.constant 0 : index
    %c0_0 = arith.constant 0 : index
    %0 = vector.load %arg1[%c0, %c0_0] : memref<504x128xf32, #tpu.memory_space<vmem>>, vector<504x128xf32>
    %1 = arith.truncf %0 : vector<504x128xf32> to vector<504x128xbf16>
    %c0_1 = arith.constant 0 : index
    %c0_2 = arith.constant 0 : index
    %2 = vector.load %arg3[%c0_1, %c0_2] : memref<128x128xbf16, #tpu.memory_space<vmem>>, vector<128x128xbf16>
    %cst = arith.constant dense<0.000000e+00> : vector<504x128xf32>
    %3 = tpu.matmul %1, %2, %cst {dimension_numbers = #tpu.dot_dimension_numbers<[1], [0], [0], [1], [0, 0, 1, 1], [], []>} : vector<504x128xbf16>, vector<128x128xbf16>, vector<504x128xf32> -> vector<504x128xf32>
    %c0_3 = arith.constant 0 : index
    %c0_4 = arith.constant 0 : index
    %4 = vector.load %arg4[%c0_3, %c0_4] : memref<1x128xf32, #tpu.memory_space<vmem>>, vector<1x128xf32>
    %5 = vector.broadcast %4 : vector<1x128xf32> to vector<504x128xf32>
    %6 = arith.addf %3, %5 : vector<504x128xf32>
    %7 = arith.truncf %6 : vector<504x128xf32> to vector<504x128xbf16>
    %cst_5 = arith.constant 0.000000e+00 : bf16
    %8 = vector.broadcast %cst_5 : bf16 to vector<504x128xbf16>
    %9 = arith.maximumf %7, %8 : vector<504x128xbf16>
    %c0_6 = arith.constant 0 : index
    %c0_7 = arith.constant 0 : index
    %10 = vector.load %arg5[%c0_6, %c0_7] : memref<128x128xbf16, #tpu.memory_space<vmem>>, vector<128x128xbf16>
    %cst_8 = arith.constant dense<0.000000e+00> : vector<504x128xf32>
    %11 = tpu.matmul %9, %10, %cst_8 {dimension_numbers = #tpu.dot_dimension_numbers<[1], [0], [0], [1], [0, 0, 1, 1], [], []>} : vector<504x128xbf16>, vector<128x128xbf16>, vector<504x128xf32> -> vector<504x128xf32>
    %c0_9 = arith.constant 0 : index
    %c0_10 = arith.constant 0 : index
    %12 = vector.load %arg6[%c0_9, %c0_10] : memref<1x128xf32, #tpu.memory_space<vmem>>, vector<1x128xf32>
    %13 = vector.broadcast %12 : vector<1x128xf32> to vector<504x128xf32>
    %14 = arith.addf %11, %13 : vector<504x128xf32>
    %15 = arith.truncf %14 : vector<504x128xf32> to vector<504x128xbf16>
    %cst_11 = arith.constant 0.000000e+00 : bf16
    %16 = vector.broadcast %cst_11 : bf16 to vector<504x128xbf16>
    %17 = arith.maximumf %15, %16 : vector<504x128xbf16>
    %c0_12 = arith.constant 0 : index
    %c0_13 = arith.constant 0 : index
    %18 = vector.load %arg7[%c0_12, %c0_13] : memref<128x3xbf16, #tpu.memory_space<vmem>>, vector<128x3xbf16>
    %cst_14 = arith.constant dense<0.000000e+00> : vector<504x3xf32>
    %19 = tpu.matmul %17, %18, %cst_14 {dimension_numbers = #tpu.dot_dimension_numbers<[1], [0], [0], [1], [0, 0, 1, 1], [], []>} : vector<504x128xbf16>, vector<128x3xbf16>, vector<504x3xf32> -> vector<504x3xf32>
    %c0_15 = arith.constant 0 : index
    %c0_16 = arith.constant 0 : index
    %20 = vector.load %arg8[%c0_15, %c0_16] : memref<1x3xf32, #tpu.memory_space<vmem>>, vector<1x3xf32>
    %21 = vector.broadcast %20 : vector<1x3xf32> to vector<504x3xf32>
    %22 = arith.addf %19, %21 : vector<504x3xf32>
    %c0_17 = arith.constant 0 : index
    %c0_18 = arith.constant 0 : index
    %23 = vector.load %arg9[%c0_17, %c0_18] : memref<1x3xf32, #tpu.memory_space<vmem>>, vector<1x3xf32>
    %c0_19 = arith.constant 0 : index
    %c0_20 = arith.constant 0 : index
    %24 = vector.load %arg10[%c0_19, %c0_20] : memref<1x3xf32, #tpu.memory_space<vmem>>, vector<1x3xf32>
    %25 = vector.broadcast %24 : vector<1x3xf32> to vector<504x3xf32>
    %26 = arith.mulf %22, %25 : vector<504x3xf32>
    %27 = vector.broadcast %23 : vector<1x3xf32> to vector<504x3xf32>
    %28 = arith.addf %27, %26 : vector<504x3xf32>
    %c0_21 = arith.constant 0 : index
    %c0_22 = arith.constant 0 : index
    %29 = vector.load %arg2[%c0_21, %c0_22] : memref<504x1xf32, #tpu.memory_space<vmem>>, vector<504x1xf32>
    %30 = vector.broadcast %29 : vector<504x1xf32> to vector<504x3xf32>
    %31 = arith.mulf %28, %30 : vector<504x3xf32>
    %c0_23 = arith.constant 0 : index
    %c0_24 = arith.constant 0 : index
    %32 = vector.load %arg11[%c0_23, %c0_24] : memref<504x3xf32, #tpu.memory_space<vmem>>, vector<504x3xf32>
    tpu.vector_store %arg11[%c0_23, %c0_24], %31 {strides = array<i32>} : memref<504x3xf32, #tpu.memory_space<vmem>>, vector<504x3xf32>,
    return
  }
  func.func @transform_0(%arg0: i32) -> (i32, i32) {
    %c0_i32 = arith.constant 0 : i32
    %c0_i32_0 = arith.constant 0 : i32
    return %arg0, %c0_i32 : i32, i32
  }
  func.func @transform_1(%arg0: i32) -> (i32, i32) {
    %c0_i32 = arith.constant 0 : i32
    %c0_i32_0 = arith.constant 0 : i32
    return %arg0, %c0_i32 : i32, i32
  }
  func.func @transform_2(%arg0: i32) -> (i32, i32) {
    %c0_i32 = arith.constant 0 : i32
    %c0_i32_0 = arith.constant 0 : i32
    %c0_i32_1 = arith.constant 0 : i32
    return %c0_i32, %c0_i32_0 : i32, i32
  }
  func.func @transform_3(%arg0: i32) -> (i32, i32) {
    %c0_i32 = arith.constant 0 : i32
    %c0_i32_0 = arith.constant 0 : i32
    %c0_i32_1 = arith.constant 0 : i32
    return %c0_i32, %c0_i32_0 : i32, i32
  }
  func.func @transform_4(%arg0: i32) -> (i32, i32) {
    %c0_i32 = arith.constant 0 : i32
    %c0_i32_0 = arith.constant 0 : i32
    %c0_i32_1 = arith.constant 0 : i32
    return %c0_i32, %c0_i32_0 : i32, i32
  }
  func.func @transform_5(%arg0: i32) -> (i32, i32) {
    %c0_i32 = arith.constant 0 : i32
    %c0_i32_0 = arith.constant 0 : i32
    %c0_i32_1 = arith.constant 0 : i32
    return %c0_i32, %c0_i32_0 : i32, i32
  }
  func.func @transform_6(%arg0: i32) -> (i32, i32) {
    %c0_i32 = arith.constant 0 : i32
    %c0_i32_0 = arith.constant 0 : i32
    %c0_i32_1 = arith.constant 0 : i32
    return %c0_i32, %c0_i32_0 : i32, i32
  }
  func.func @transform_7(%arg0: i32) -> (i32, i32) {
    %c0_i32 = arith.constant 0 : i32
    %c0_i32_0 = arith.constant 0 : i32
    %c0_i32_1 = arith.constant 0 : i32
    return %c0_i32, %c0_i32_0 : i32, i32
  }
  func.func @transform_8(%arg0: i32) -> (i32, i32) {
    %c0_i32 = arith.constant 0 : i32
    %c0_i32_0 = arith.constant 0 : i32
    %c0_i32_1 = arith.constant 0 : i32
    return %c0_i32, %c0_i32_0 : i32, i32
  }
  func.func @transform_9(%arg0: i32) -> (i32, i32) {
    %c0_i32 = arith.constant 0 : i32
    %c0_i32_0 = arith.constant 0 : i32
    %c0_i32_1 = arith.constant 0 : i32
    return %c0_i32, %c0_i32_0 : i32, i32
  }
  func.func @transform_10(%arg0: i32) -> (i32, i32) {
    %c0_i32 = arith.constant 0 : i32
    %c0_i32_0 = arith.constant 0 : i32
    return %arg0, %c0_i32 : i32, i32
  }
}

</mosaic_0001>

<llo_original>
// kernel: tpu_custom_call.1
$region0: #{tpu_custom_call.1}
  #allocation0 [shape = 'u32[]', space=smem, size = 0x4, offset = 0x4, fixed_abs, tag = 'smem constant byte address 0x4 - core index']
  #allocation1 [shape = 'u32[144,128]{1,0:T(1,128)}', space=vmem, size = 0x12000, scoped, tag = 'internal scratch']
  %s0 = inlined_call_operand.vmem [shape: f32[1000,128], index: 0, kind: input, shape index: {}]
  %s1 = inlined_call_operand.vmem [shape: f32[1000,1], index: 1, kind: input, shape index: {}]
  %s2 = inlined_call_operand.vmem [shape: bf16[128,128], index: 2, kind: input, shape index: {}]
  %s3 = inlined_call_operand.vmem [shape: f32[1,128], index: 3, kind: input, shape index: {}]
  %s4 = inlined_call_operand.hbm [shape: bf16[128,128], index: 4, kind: input, shape index: {}]
  %s5 = inlined_call_operand.vmem [shape: f32[1,128], index: 5, kind: input, shape index: {}]
  %s6 = inlined_call_operand.vmem [shape: bf16[128,3], index: 6, kind: input, shape index: {}]
  %s7 = inlined_call_operand.vmem [shape: f32[1,3], index: 7, kind: input, shape index: {}]
  %s8 = inlined_call_operand.vmem [shape: f32[1,3], index: 8, kind: input, shape index: {}]
  %s9 = inlined_call_operand.vmem [shape: f32[1,3], index: 9, kind: input, shape index: {}]
  %s10 = inlined_call_operand.vmem [shape: f32[1000,3], index: 10, kind: output, shape index: {}]
  %s11 = sld [smem:[#allocation0]]
  $region125: #{tpu_custom_call.1} parent=0
    _
  %s13 = ssub.s32 1, %s11
  %s14 = scalar_select 0, %s13, %s11
  $region1: #{tpu_custom_call.1} parent=0
    #allocation2 [shape = 'u8[32768]{0}', space=vmem, size = 0x8000, scoped, tag = 'input window, operand 4, single buffered']
    #allocation3 [shape = 's32[2]{0}', space=sflag, size = 0x8, scoped, tag = 'scoped memory for tpu_custom_call.1']
    #allocation4 [shape = 'u8[516096]{0}', space=vmem, size = 0x7e000, scoped, tag = 'output window, operand 0']
    %15 = vsyncpa [#allocation3], 0
    loop: start=0, step=1, limit=4
    $region2: #{tpu_custom_call.1} parent=1 // loop_pre_header
      _
    $region3: #{tpu_custom_call.1} parent=1 // loop_header
      %s17 = sphi 0, %s21
      %p18 = scmp.ge.s32.totalorder %s17, 4
      %s27 = sphi 0, %s29
      %s30 = sphi 0, %s27
      %s31 = sphi 0, %s30
      %s47 = sphi 0, %s31
      %s53 = sphi 0, %s55
      %s56 = sphi 0, %s53
      %s57 = sphi 0, %s56
      %s73 = sphi 0, %s57
      %s77 = sphi 0, %s77
      %s79 = sphi 0, %s77
      %s80 = sphi 0, %s79
      %s94 = sphi 0, %s80
      %s98 = sphi 0, %s98
      %s100 = sphi 0, %s98
      %s101 = sphi 0, %s100
      %s115 = sphi 0, %s101
      %s119 = sphi 0, %s119
      %s121 = sphi 0, %s119
      %s122 = sphi 0, %s121
      %s136 = sphi 0, %s122
      %s140 = sphi 0, %s140
      %s142 = sphi 0, %s140
      %s143 = sphi 0, %s142
      %s157 = sphi 0, %s143
      %s161 = sphi 0, %s161
      %s163 = sphi 0, %s161
      %s164 = sphi 0, %s163
      %s178 = sphi 0, %s164
      %s182 = sphi 0, %s182
      %s184 = sphi 0, %s182
      %s185 = sphi 0, %s184
      %s199 = sphi 0, %s185
      %s203 = sphi 0, %s203
      %s205 = sphi 0, %s203
      %s206 = sphi 0, %s205
      %s220 = sphi 0, %s206
      %s224 = sphi 0, %s224
      %s226 = sphi 0, %s224
      %s227 = sphi 0, %s226
      %s241 = sphi 0, %s227
      %s247 = sphi 0, %s249
      %s250 = sphi 0, %s247
      %s251 = sphi 0, %s250
      %s267 = sphi 0, %s251
    $region4: #{tpu_custom_call.1} parent=1 // loop_header_branch
      %20 = sbr.rel (%p18) target = $region8
    $region5: #{tpu_custom_call.1} parent=1 // loop_body
      %s22 = ssub.s32 %s17, 1
      %s23 = ssub.s32 %s17, 2
      %s24 = sadd.s32 %s17, 1
      %s25 = ssub.s32 %s17, %s24
      %p26 = scmp.eq.s32.totalorder %s25, 0
      %s28 = sadd.s32 %s27, 1
      %s29 = scalar_select %p26, %s27, %s28
      %p32 = pneg %p26
      %p33 = scmp.eq.s32.totalorder %s17, 1
      %p34 = por %p32, %p33
      %p35 = scmp.ne.s32.totalorder %s27, %s30
      %p36 = scmp.eq.s32.totalorder %s17, 0
      %p37 = por %p35, %p36
      %p38 = scmp.ne.s32.totalorder %s27, %s30
      %p39 = scmp.eq.s32.totalorder %s22, 1
      %p40 = por %p38, %p39
      %p41 = scmp.ne.s32.totalorder %s30, %s31
      %p42 = scmp.eq.s32.totalorder %s22, 0
      %p43 = por %p41, %p42
      %p44 = scmp.ne.s32.totalorder %s30, %s31
      %p45 = scmp.eq.s32.totalorder %s23, 1
      %p46 = por %p44, %p45
      %p48 = scmp.ne.s32.totalorder %s31, %s47
      %p49 = scmp.eq.s32.totalorder %s23, 0
      %p50 = por %p48, %p49
      %s51 = ssub.s32 %s17, %s24
      %p52 = scmp.eq.s32.totalorder %s51, 0
      %s54 = sadd.s32 %s53, 1
      %s55 = scalar_select %p52, %s53, %s54
      %p58 = pneg %p52
      %p59 = scmp.eq.s32.totalorder %s17, 1
      %p60 = por %p58, %p59
      %p61 = scmp.ne.s32.totalorder %s53, %s56
      %p62 = scmp.eq.s32.totalorder %s17, 0
      %p63 = por %p61, %p62
      %p64 = scmp.ne.s32.totalorder %s53, %s56
      %p65 = scmp.eq.s32.totalorder %s22, 1
      %p66 = por %p64, %p65
      %p67 = scmp.ne.s32.totalorder %s56, %s57
      %p68 = scmp.eq.s32.totalorder %s22, 0
      %p69 = por %p67, %p68
      %p70 = scmp.ne.s32.totalorder %s56, %s57
      %p71 = scmp.eq.s32.totalorder %s23, 1
      %p72 = por %p70, %p71
      %p74 = scmp.ne.s32.totalorder %s57, %s73
      %p75 = scmp.eq.s32.totalorder %s23, 0
      %p76 = por %p74, %p75
      %s78 = sadd.s32 %s77, 1
      %p81 = scmp.eq.s32.totalorder %s17, 1
      %p82 = scmp.ne.s32.totalorder %s77, %s79
      %p83 = scmp.eq.s32.totalorder %s17, 0
      %p84 = por %p82, %p83
      %p85 = scmp.ne.s32.totalorder %s77, %s79
      %p86 = scmp.eq.s32.totalorder %s22, 1
      %p87 = por %p85, %p86
      %p88 = scmp.ne.s32.totalorder %s79, %s80
      %p89 = scmp.eq.s32.totalorder %s22, 0
      %p90 = por %p88, %p89
      %p91 = scmp.ne.s32.totalorder %s79, %s80
      %p92 = scmp.eq.s32.totalorder %s23, 1
      %p93 = por %p91, %p92
      %p95 = scmp.ne.s32.totalorder %s80, %s94
      %p96 = scmp.eq.s32.totalorder %s23, 0
      %p97 = por %p95, %p96
      %s99 = sadd.s32 %s98, 1
      %p102 = scmp.eq.s32.totalorder %s17, 1
      %p103 = scmp.ne.s32.totalorder %s98, %s100
      %p104 = scmp.eq.s32.totalorder %s17, 0
      %p105 = por %p103, %p104
      %p106 = scmp.ne.s32.totalorder %s98, %s100
      %p107 = scmp.eq.s32.totalorder %s22, 1
      %p108 = por %p106, %p107
      %p109 = scmp.ne.s32.totalorder %s100, %s101
      %p110 = scmp.eq.s32.totalorder %s22, 0
      %p111 = por %p109, %p110
      %p112 = scmp.ne.s32.totalorder %s100, %s101
      %p113 = scmp.eq.s32.totalorder %s23, 1
      %p114 = por %p112, %p113
      %p116 = scmp.ne.s32.totalorder %s101, %s115
      %p117 = scmp.eq.s32.totalorder %s23, 0
      %p118 = por %p116, %p117
      %s120 = sadd.s32 %s119, 1
      %p123 = scmp.eq.s32.totalorder %s17, 1
      %p124 = scmp.ne.s32.totalorder %s119, %s121
      %p125 = scmp.eq.s32.totalorder %s17, 0
      %p126 = por %p124, %p125
      %p127 = scmp.ne.s32.totalorder %s119, %s121
      %p128 = scmp.eq.s32.totalorder %s22, 1
      %p129 = por %p127, %p128
      %p130 = scmp.ne.s32.totalorder %s121, %s122
      %p131 = scmp.eq.s32.totalorder %s22, 0
      %p132 = por %p130, %p131
      %p133 = scmp.ne.s32.totalorder %s121, %s122
      %p134 = scmp.eq.s32.totalorder %s23, 1
      %p135 = por %p133, %p134
      %p137 = scmp.ne.s32.totalorder %s122, %s136
      %p138 = scmp.eq.s32.totalorder %s23, 0
      %p139 = por %p137, %p138
      %s141 = sadd.s32 %s140, 1
      %p144 = scmp.eq.s32.totalorder %s17, 1
      %p145 = scmp.ne.s32.totalorder %s140, %s142
      %p146 = scmp.eq.s32.totalorder %s17, 0
      %p147 = por %p145, %p146
      %p148 = scmp.ne.s32.totalorder %s140, %s142
      %p149 = scmp.eq.s32.totalorder %s22, 1
      %p150 = por %p148, %p149
      %p151 = scmp.ne.s32.totalorder %s142, %s143
      %p152 = scmp.eq.s32.totalorder %s22, 0
      %p153 = por %p151, %p152
      %p154 = scmp.ne.s32.totalorder %s142, %s143
      %p155 = scmp.eq.s32.totalorder %s23, 1
      %p156 = por %p154, %p155
      %p158 = scmp.ne.s32.totalorder %s143, %s157
      %p159 = scmp.eq.s32.totalorder %s23, 0
      %p160 = por %p158, %p159
      %s162 = sadd.s32 %s161, 1
      %p165 = scmp.eq.s32.totalorder %s17, 1
      %p166 = scmp.ne.s32.totalorder %s161, %s163
      %p167 = scmp.eq.s32.totalorder %s17, 0
      %p168 = por %p166, %p167
      %p169 = scmp.ne.s32.totalorder %s161, %s163
      %p170 = scmp.eq.s32.totalorder %s22, 1
      %p171 = por %p169, %p170
      %p172 = scmp.ne.s32.totalorder %s163, %s164
      %p173 = scmp.eq.s32.totalorder %s22, 0
      %p174 = por %p172, %p173
      %p175 = scmp.ne.s32.totalorder %s163, %s164
      %p176 = scmp.eq.s32.totalorder %s23, 1
      %p177 = por %p175, %p176
      %p179 = scmp.ne.s32.totalorder %s164, %s178
      %p180 = scmp.eq.s32.totalorder %s23, 0
      %p181 = por %p179, %p180
      %s183 = sadd.s32 %s182, 1
      %p186 = scmp.eq.s32.totalorder %s17, 1
      %p187 = scmp.ne.s32.totalorder %s182, %s184
      %p188 = scmp.eq.s32.totalorder %s17, 0
      %p189 = por %p187, %p188
      %p190 = scmp.ne.s32.totalorder %s182, %s184
      %p191 = scmp.eq.s32.totalorder %s22, 1
      %p192 = por %p190, %p191
      %p193 = scmp.ne.s32.totalorder %s184, %s185
      %p194 = scmp.eq.s32.totalorder %s22, 0
      %p195 = por %p193, %p194
      %p196 = scmp.ne.s32.totalorder %s184, %s185
      %p197 = scmp.eq.s32.totalorder %s23, 1
      %p198 = por %p196, %p197
      %p200 = scmp.ne.s32.totalorder %s185, %s199
      %p201 = scmp.eq.s32.totalorder %s23, 0
      %p202 = por %p200, %p201
      %s204 = sadd.s32 %s203, 1
      %p207 = scmp.eq.s32.totalorder %s17, 1
      %p208 = scmp.ne.s32.totalorder %s203, %s205
      %p209 = scmp.eq.s32.totalorder %s17, 0
      %p210 = por %p208, %p209
      %p211 = scmp.ne.s32.totalorder %s203, %s205
      %p212 = scmp.eq.s32.totalorder %s22, 1
      %p213 = por %p211, %p212
      %p214 = scmp.ne.s32.totalorder %s205, %s206
      %p215 = scmp.eq.s32.totalorder %s22, 0
      %p216 = por %p214, %p215
      %p217 = scmp.ne.s32.totalorder %s205, %s206
      %p218 = scmp.eq.s32.totalorder %s23, 1
      %p219 = por %p217, %p218
      %p221 = scmp.ne.s32.totalorder %s206, %s220
      %p222 = scmp.eq.s32.totalorder %s23, 0
      %p223 = por %p221, %p222
      %s225 = sadd.s32 %s224, 1
      %p228 = scmp.eq.s32.totalorder %s17, 1
      %p229 = scmp.ne.s32.totalorder %s224, %s226
      %p230 = scmp.eq.s32.totalorder %s17, 0
      %p231 = por %p229, %p230
      %p232 = scmp.ne.s32.totalorder %s224, %s226
      %p233 = scmp.eq.s32.totalorder %s22, 1
      %p234 = por %p232, %p233
      %p235 = scmp.ne.s32.totalorder %s226, %s227
      %p236 = scmp.eq.s32.totalorder %s22, 0
      %p237 = por %p235, %p236
      %p238 = scmp.ne.s32.totalorder %s226, %s227
      %p239 = scmp.eq.s32.totalorder %s23, 1
      %p240 = por %p238, %p239
      %p242 = scmp.ne.s32.totalorder %s227, %s241
      %p243 = scmp.eq.s32.totalorder %s23, 0
      %p244 = por %p242, %p243
      %s245 = ssub.s32 %s17, %s24
      %p246 = scmp.eq.s32.totalorder %s245, 0
      %s248 = sadd.s32 %s247, 1
      %s249 = scalar_select %p246, %s247, %s248
      %p252 = pneg %p246
      %p253 = scmp.eq.s32.totalorder %s17, 1
      %p254 = por %p252, %p253
      %p255 = scmp.ne.s32.totalorder %s247, %s250
      %p256 = scmp.eq.s32.totalorder %s17, 0
      %p257 = por %p255, %p256
      %p258 = scmp.ne.s32.totalorder %s247, %s250
      %p259 = scmp.eq.s32.totalorder %s22, 1
      %p260 = por %p258, %p259
      %p261 = scmp.ne.s32.totalorder %s250, %s251
      %p262 = scmp.eq.s32.totalorder %s22, 0
      %p263 = por %p261, %p262
      %p264 = scmp.ne.s32.totalorder %s250, %s251
      %p265 = scmp.eq.s32.totalorder %s23, 1
      %p266 = por %p264, %p265
      %p268 = scmp.ne.s32.totalorder %s251, %s267
      %p269 = scmp.eq.s32.totalorder %s23, 0
      %p270 = por %p268, %p269
      %p271 = scmp.le.s32.totalorder 1, %s17
      %p272 = scmp.lt.s32.totalorder %s17, 3
      %p273 = pnand %p271, %p272
      %p274 = pneg %p273
      // Predicated region
      $region9: #{tpu_custom_call.1} parent=5 // pred_check
        _
      $region10: #{tpu_custom_call.1} parent=5 // pred_check_branch
        %276 = sbr.rel (%p273) target = $region12
      $region11: #{tpu_custom_call.1} parent=5 // pred_region
        %s277 = ssub.s32 %s17, 1
        // Predicated region
        $region13: #{tpu_custom_call.1} parent=11 // pred_check
          %p278 = pneg %p90
        $region14: #{tpu_custom_call.1} parent=11 // pred_check_branch
          %280 = sbr.rel (%p278) target = $region16
        $region15: #{tpu_custom_call.1} parent=11 // pred_region
          _
        $region16: #{tpu_custom_call.1} parent=11 // pred_fallthru
          _
        // Predicated region
        $region17: #{tpu_custom_call.1} parent=11 // pred_check
          %p281 = pneg %p111
        $region18: #{tpu_custom_call.1} parent=11 // pred_check_branch
          %283 = sbr.rel (%p281) target = $region20
        $region19: #{tpu_custom_call.1} parent=11 // pred_region
          _
        $region20: #{tpu_custom_call.1} parent=11 // pred_fallthru
          _
        // Predicated region
        $region21: #{tpu_custom_call.1} parent=11 // pred_check
          %p284 = pneg %p132
        $region22: #{tpu_custom_call.1} parent=11 // pred_check_branch
          %286 = sbr.rel (%p284) target = $region24
        $region23: #{tpu_custom_call.1} parent=11 // pred_region
          %s288 = ssub.s32 1024, 1024
          %289 = vsyncadd [#allocation3], %s288
          %s290 = sshll.u32 [#allocation2], 4
          %s291 = int_to_ptr.vmem [resolvable:$true] %s290
          %296 = dma.hbm_to_vmem [thread:$0]  %s4, 1024, %s291, [#allocation3], 64, 64, 4
        $region24: #{tpu_custom_call.1} parent=11 // pred_fallthru
          _
        // Predicated region
        $region25: #{tpu_custom_call.1} parent=11 // pred_check
          %p297 = pneg %p153
        $region26: #{tpu_custom_call.1} parent=11 // pred_check_branch
          %299 = sbr.rel (%p297) target = $region28
        $region27: #{tpu_custom_call.1} parent=11 // pred_region
          _
        $region28: #{tpu_custom_call.1} parent=11 // pred_fallthru
          _
        // Predicated region
        $region29: #{tpu_custom_call.1} parent=11 // pred_check
          %p300 = pneg %p174
        $region30: #{tpu_custom_call.1} parent=11 // pred_check_branch
          %302 = sbr.rel (%p300) target = $region32
        $region31: #{tpu_custom_call.1} parent=11 // pred_region
          _
        $region32: #{tpu_custom_call.1} parent=11 // pred_fallthru
          _
        // Predicated region
        $region33: #{tpu_custom_call.1} parent=11 // pred_check
          %p303 = pneg %p195
        $region34: #{tpu_custom_call.1} parent=11 // pred_check_branch
          %305 = sbr.rel (%p303) target = $region36
        $region35: #{tpu_custom_call.1} parent=11 // pred_region
          _
        $region36: #{tpu_custom_call.1} parent=11 // pred_fallthru
          _
        // Predicated region
        $region37: #{tpu_custom_call.1} parent=11 // pred_check
          %p306 = pneg %p216
        $region38: #{tpu_custom_call.1} parent=11 // pred_check_branch
          %308 = sbr.rel (%p306) target = $region40
        $region39: #{tpu_custom_call.1} parent=11 // pred_region
          _
        $region40: #{tpu_custom_call.1} parent=11 // pred_fallthru
          _
        // Predicated region
        $region41: #{tpu_custom_call.1} parent=11 // pred_check
          %p309 = pneg %p237
        $region42: #{tpu_custom_call.1} parent=11 // pred_check_branch
          %311 = sbr.rel (%p309) target = $region44
        $region43: #{tpu_custom_call.1} parent=11 // pred_region
          _
        $region44: #{tpu_custom_call.1} parent=11 // pred_fallthru
          _
      $region12: #{tpu_custom_call.1} parent=5 // pred_fallthru
        _
      %p312 = scmp.lt.s32.totalorder %s17, 2
      // Predicated region
      $region45: #{tpu_custom_call.1} parent=5 // pred_check
        %p313 = pneg %p312
      $region46: #{tpu_custom_call.1} parent=5 // pred_check_branch
        %315 = sbr.rel (%p313) target = $region48
      $region47: #{tpu_custom_call.1} parent=5 // pred_region
        // Predicated region
        $region49: #{tpu_custom_call.1} parent=47 // pred_check
          %p316 = pneg %p37
        $region50: #{tpu_custom_call.1} parent=47 // pred_check_branch
          %318 = sbr.rel (%p316) target = $region52
        $region51: #{tpu_custom_call.1} parent=47 // pred_region
          %s319 = smul.u32 63, %s17
          %s320 = ssub.s32 125, %s319
          %p321 = scmp.lt.s32.totalorder %s320, 63
          %s322 = scalar_select %p321, %s320, 63
          %s323 = smul.u32 128, %s322
          %p324 = scmp.lt.s32.totalorder %s319, 124
          %s325 = scalar_select %p324, %s319, 124
          %s326 = smul.addr %s325, 8
          %s327 = scalar_lea.vmem %s0, %s326
          %s328 = smul.u32 63, %s17
          %s329 = ssub.s32 125, %s328
          %p330 = scmp.lt.s32.totalorder %s329, 63
          %s331 = scalar_select %p330, %s329, 63
          %s332 = smul.u32 128, %s331
        $region52: #{tpu_custom_call.1} parent=47 // pred_fallthru
          _
        // Predicated region
        $region53: #{tpu_custom_call.1} parent=47 // pred_check
          %p333 = pneg %p63
        $region54: #{tpu_custom_call.1} parent=47 // pred_check_branch
          %335 = sbr.rel (%p333) target = $region56
        $region55: #{tpu_custom_call.1} parent=47 // pred_region
          %s336 = smul.u32 63, %s17
          %s337 = ssub.s32 125, %s336
          %p338 = scmp.lt.s32.totalorder %s337, 63
          %s339 = scalar_select %p338, %s337, 63
          %s340 = smul.u32 128, %s339
          %p341 = scmp.lt.s32.totalorder %s336, 124
          %s342 = scalar_select %p341, %s336, 124
          %s343 = smul.addr %s342, 8
          %s344 = scalar_lea.vmem %s1, %s343
          %s345 = smul.u32 63, %s17
          %s346 = ssub.s32 125, %s345
          %p347 = scmp.lt.s32.totalorder %s346, 63
          %s348 = scalar_select %p347, %s346, 63
          %s349 = smul.u32 128, %s348
        $region56: #{tpu_custom_call.1} parent=47 // pred_fallthru
          _
      $region48: #{tpu_custom_call.1} parent=5 // pred_fallthru
        _
      %p350 = scmp.le.s32.totalorder 1, %s17
      %p351 = scmp.lt.s32.totalorder %s17, 3
      %p352 = pnand %p350, %p351
      %p353 = pneg %p352
      // Predicated region
      $region57: #{tpu_custom_call.1} parent=5 // pred_check
        _
      $region58: #{tpu_custom_call.1} parent=5 // pred_check_branch
        %355 = sbr.rel (%p352) target = $region60
      $region59: #{tpu_custom_call.1} parent=5 // pred_region
        %s356 = ssub.s32 %s17, 1
        // Predicated region
        $region61: #{tpu_custom_call.1} parent=59 // pred_check
          %p357 = pneg %p132
        $region62: #{tpu_custom_call.1} parent=59 // pred_check_branch
          %359 = sbr.rel (%p357) target = $region64
        $region63: #{tpu_custom_call.1} parent=59 // pred_region
          %360 = dma.done [#allocation3], 1024
        $region64: #{tpu_custom_call.1} parent=59 // pred_fallthru
          _
        %s361 = smul.u32 63, %s22
        %s362 = ssub.s32 125, %s361
        %p363 = scmp.lt.s32.totalorder %s362, 63
        %s364 = scalar_select %p363, %s362, 63
        %s365 = smul.u32 128, %s364
        %p366 = scmp.lt.s32.totalorder %s361, 124
        %s367 = scalar_select %p366, %s361, 124
        %s368 = smul.addr %s367, 8
        %s369 = scalar_lea.vmem %s0, %s368
        %p370 = pneg %p43
        %p371 = pneg %p40
        %s372 = smul.u32 63, %s22
        %s373 = ssub.s32 125, %s372
        %p374 = scmp.lt.s32.totalorder %s373, 63
        %s375 = scalar_select %p374, %s373, 63
        %s376 = smul.u32 128, %s375
        %p377 = scmp.lt.s32.totalorder %s372, 124
        %s378 = scalar_select %p377, %s372, 124
        %s379 = smul.addr %s378, 8
        %s380 = scalar_lea.vmem %s1, %s379
        %p381 = pneg %p69
        %p382 = pneg %p66
        %p383 = pneg %p90
        %p384 = pneg %p87
        %p385 = pneg %p111
        %p386 = pneg %p108
        %p387 = pneg %p132
        %p388 = pneg %p129
        %p389 = pneg %p153
        %p390 = pneg %p150
        %p391 = pneg %p174
        %p392 = pneg %p171
        %p393 = pneg %p195
        %p394 = pneg %p192
        %p395 = pneg %p216
        %p396 = pneg %p213
        %p397 = pneg %p237
        %p398 = pneg %p234
        %p399 = pneg %p263
        %p400 = pneg %p260
        %s401 = sand.u32 %s250, 1
        %s402 = sand.u32 %s250, 1
        %s403 = smul.addr %s402, 504
        %s404 = scalar_lea.vmem [#allocation4], %s403
        %s405 = smul.u32 63, %s22
        %s406 = ssub.s32 125, %s405
        %p407 = scmp.lt.s32.totalorder %s406, 63
        %s408 = scalar_select %p407, %s406, 63
        %s409 = smul.u32 128, %s408
        %p410 = scmp.lt.s32.totalorder %s405, 124
        %s411 = scalar_select %p410, %s405, 124
        %s412 = smul.addr %s411, 8
        %s413 = scalar_lea.vmem %s0, %s412
        %s414 = smul.u32 63, %s22
        %s415 = ssub.s32 125, %s414
        %p416 = scmp.lt.s32.totalorder %s415, 63
        %s417 = scalar_select %p416, %s415, 63
        %s418 = smul.u32 128, %s417
        %s419 = smul.u32 63, %s22
        %s420 = ssub.s32 125, %s419
        %p421 = scmp.lt.s32.totalorder %s420, 63
        %s422 = scalar_select %p421, %s420, 63
        %s423 = smul.u32 128, %s422
        %p424 = scmp.lt.s32.totalorder %s419, 124
        %s425 = scalar_select %p424, %s419, 124
        %s426 = smul.addr %s425, 8
        %s427 = scalar_lea.vmem %s1, %s426
        %s428 = smul.u32 63, %s22
        %s429 = ssub.s32 125, %s428
        %p430 = scmp.lt.s32.totalorder %s429, 63
        %s431 = scalar_select %p430, %s429, 63
        %s432 = smul.u32 128, %s431
        %s433 = smul.u32 63, %s22
        %s434 = ssub.s32 125, %s433
        %p435 = scmp.lt.s32.totalorder %s434, 63
        %s436 = scalar_select %p435, %s434, 63
        %s437 = smul.u32 128, %s436
        %v439 = vld [vmem:[%s413] sm:$0xff]
        %v440 = vld [vmem:[%s413 + $0x8] sm:$0xff]
        %v441 = vld [vmem:[%s413 + $0x10] sm:$0xff]
        %v442 = vld [vmem:[%s413 + $0x18] sm:$0xff]
        %v443 = vld [vmem:[%s413 + $0x20] sm:$0xff]
        %v444 = vld [vmem:[%s413 + $0x28] sm:$0xff]
        %v445 = vld [vmem:[%s413 + $0x30] sm:$0xff]
        %v446 = vld [vmem:[%s413 + $0x38] sm:$0xff]
        %v447 = vld [vmem:[%s413 + $0x40] sm:$0xff]
        %v448 = vld [vmem:[%s413 + $0x48] sm:$0xff]
        %v449 = vld [vmem:[%s413 + $0x50] sm:$0xff]
        %v450 = vld [vmem:[%s413 + $0x58] sm:$0xff]
        %v451 = vld [vmem:[%s413 + $0x60] sm:$0xff]
        %v452 = vld [vmem:[%s413 + $0x68] sm:$0xff]
        %v453 = vld [vmem:[%s413 + $0x70] sm:$0xff]
        %v454 = vld [vmem:[%s413 + $0x78] sm:$0xff]
        %v455 = vld [vmem:[%s413 + $0x80] sm:$0xff]
        %v456 = vld [vmem:[%s413 + $0x88] sm:$0xff]
        %v457 = vld [vmem:[%s413 + $0x90] sm:$0xff]
        %v458 = vld [vmem:[%s413 + $0x98] sm:$0xff]
        %v459 = vld [vmem:[%s413 + $0xa0] sm:$0xff]
        %v460 = vld [vmem:[%s413 + $0xa8] sm:$0xff]
        %v461 = vld [vmem:[%s413 + $0xb0] sm:$0xff]
        %v462 = vld [vmem:[%s413 + $0xb8] sm:$0xff]
        %v463 = vld [vmem:[%s413 + $0xc0] sm:$0xff]
        %v464 = vld [vmem:[%s413 + $0xc8] sm:$0xff]
        %v465 = vld [vmem:[%s413 + $0xd0] sm:$0xff]
        %v466 = vld [vmem:[%s413 + $0xd8] sm:$0xff]
        %v467 = vld [vmem:[%s413 + $0xe0] sm:$0xff]
        %v468 = vld [vmem:[%s413 + $0xe8] sm:$0xff]
        %v469 = vld [vmem:[%s413 + $0xf0] sm:$0xff]
        %v470 = vld [vmem:[%s413 + $0xf8] sm:$0xff]
        %v471 = vld [vmem:[%s413 + $0x100] sm:$0xff]
        %v472 = vld [vmem:[%s413 + $0x108] sm:$0xff]
        %v473 = vld [vmem:[%s413 + $0x110] sm:$0xff]
        %v474 = vld [vmem:[%s413 + $0x118] sm:$0xff]
        %v475 = vld [vmem:[%s413 + $0x120] sm:$0xff]
        %v476 = vld [vmem:[%s413 + $0x128] sm:$0xff]
        %v477 = vld [vmem:[%s413 + $0x130] sm:$0xff]
        %v478 = vld [vmem:[%s413 + $0x138] sm:$0xff]
        %v479 = vld [vmem:[%s413 + $0x140] sm:$0xff]
        %v480 = vld [vmem:[%s413 + $0x148] sm:$0xff]
        %v481 = vld [vmem:[%s413 + $0x150] sm:$0xff]
        %v482 = vld [vmem:[%s413 + $0x158] sm:$0xff]
        %v483 = vld [vmem:[%s413 + $0x160] sm:$0xff]
        %v484 = vld [vmem:[%s413 + $0x168] sm:$0xff]
        %v485 = vld [vmem:[%s413 + $0x170] sm:$0xff]
        %v486 = vld [vmem:[%s413 + $0x178] sm:$0xff]
        %v487 = vld [vmem:[%s413 + $0x180] sm:$0xff]
        %v488 = vld [vmem:[%s413 + $0x188] sm:$0xff]
        %v489 = vld [vmem:[%s413 + $0x190] sm:$0xff]
        %v490 = vld [vmem:[%s413 + $0x198] sm:$0xff]
        %v491 = vld [vmem:[%s413 + $0x1a0] sm:$0xff]
        %v492 = vld [vmem:[%s413 + $0x1a8] sm:$0xff]
        %v493 = vld [vmem:[%s413 + $0x1b0] sm:$0xff]
        %v494 = vld [vmem:[%s413 + $0x1b8] sm:$0xff]
        %v495 = vld [vmem:[%s413 + $0x1c0] sm:$0xff]
        %v496 = vld [vmem:[%s413 + $0x1c8] sm:$0xff]
        %v497 = vld [vmem:[%s413 + $0x1d0] sm:$0xff]
        %v498 = vld [vmem:[%s413 + $0x1d8] sm:$0xff]
        %v499 = vld [vmem:[%s413 + $0x1e0] sm:$0xff]
        %v500 = vld [vmem:[%s413 + $0x1e8] sm:$0xff]
        %v501 = vld [vmem:[%s413 + $0x1f0] sm:$0xff]
        %v502 = vpack.c.bf16 %v440, %v439
        %v503 = vpack.c.bf16 %v442, %v441
        %v504 = vpack.c.bf16 %v444, %v443
        %v505 = vpack.c.bf16 %v446, %v445
        %v506 = vpack.c.bf16 %v448, %v447
        %v507 = vpack.c.bf16 %v450, %v449
        %v508 = vpack.c.bf16 %v452, %v451
        %v509 = vpack.c.bf16 %v454, %v453
        %v510 = vpack.c.bf16 %v456, %v455
        %v511 = vpack.c.bf16 %v458, %v457
        %v512 = vpack.c.bf16 %v460, %v459
        %v513 = vpack.c.bf16 %v462, %v461
        %v514 = vpack.c.bf16 %v464, %v463
        %v515 = vpack.c.bf16 %v466, %v465
        %v516 = vpack.c.bf16 %v468, %v467
        %v517 = vpack.c.bf16 %v470, %v469
        %v518 = vpack.c.bf16 %v472, %v471
        %v519 = vpack.c.bf16 %v474, %v473
        %v520 = vpack.c.bf16 %v476, %v475
        %v521 = vpack.c.bf16 %v478, %v477
        %v522 = vpack.c.bf16 %v480, %v479
        %v523 = vpack.c.bf16 %v482, %v481
        %v524 = vpack.c.bf16 %v484, %v483
        %v525 = vpack.c.bf16 %v486, %v485
        %v526 = vpack.c.bf16 %v488, %v487
        %v527 = vpack.c.bf16 %v490, %v489
        %v528 = vpack.c.bf16 %v492, %v491
        %v529 = vpack.c.bf16 %v494, %v493
        %v530 = vpack.c.bf16 %v496, %v495
        %v531 = vpack.c.bf16 %v498, %v497
        %v532 = vpack.c.bf16 %v500, %v499
        %v533 = vpack.c.bf16 %v501, %v501
        %v534 = vld [vmem:[%s2] sm:$0xf]
        %v535 = vld [vmem:[%s2 + $0x4] sm:$0xf]
        %v536 = vld [vmem:[%s2 + $0x8] sm:$0xf]
        %v537 = vld [vmem:[%s2 + $0xc] sm:$0xf]
        %v538 = vld [vmem:[%s2 + $0x10] sm:$0xf]
        %v539 = vld [vmem:[%s2 + $0x14] sm:$0xf]
        %v540 = vld [vmem:[%s2 + $0x18] sm:$0xf]
        %v541 = vld [vmem:[%s2 + $0x1c] sm:$0xf]
        %v542 = vld [vmem:[%s2 + $0x20] sm:$0xf]
        %v543 = vld [vmem:[%s2 + $0x24] sm:$0xf]
        %v544 = vld [vmem:[%s2 + $0x28] sm:$0xf]
        %v545 = vld [vmem:[%s2 + $0x2c] sm:$0xf]
        %v546 = vld [vmem:[%s2 + $0x30] sm:$0xf]
        %v547 = vld [vmem:[%s2 + $0x34] sm:$0xf]
        %v548 = vld [vmem:[%s2 + $0x38] sm:$0xf]
        %v549 = vld [vmem:[%s2 + $0x3c] sm:$0xf]
        %v550 = vld [vmem:[%s3] sm:$0x1]
        %v552 = vlaneseq
        %v553 = vshrl.u32 %v552, 7
        %v554 = vsub.s32 0, %v553
        %v555 = vrot.slane %v550, %v554
        %v573 = vunpack.c.l.b16 %v534
        %v574 = vunpack.c.l.b16 %v535
        %v575 = vunpack.c.l.b16 %v536
        %v576 = vunpack.c.l.b16 %v537
        %v577 = vunpack.c.l.b16 %v538
        %v578 = vunpack.c.l.b16 %v539
        %v579 = vunpack.c.l.b16 %v540
        %v580 = vunpack.c.l.b16 %v541
        %v581 = vunpack.c.l.b16 %v542
        %v582 = vunpack.c.l.b16 %v543
        %v583 = vunpack.c.l.b16 %v544
        %v584 = vunpack.c.l.b16 %v545
        %v585 = vunpack.c.l.b16 %v546
        %v586 = vunpack.c.l.b16 %v547
        %v587 = vunpack.c.l.b16 %v548
        %v588 = vunpack.c.l.b16 %v549
        %v589 = vpack.c.b16 %v574, %v573
        %v590 = vpack.c.b16 %v576, %v575
        %v591 = vpack.c.b16 %v578, %v577
        %v592 = vpack.c.b16 %v580, %v579
        %v593 = vpack.c.b16 %v582, %v581
        %v594 = vpack.c.b16 %v584, %v583
        %v595 = vpack.c.b16 %v586, %v585
        %v596 = vpack.c.b16 %v588, %v587
        %605 = vmatprep.subr.bf16.mxu0 0
        %606 = vmatpush1.bf16.msra.mxu0 %v589
        %607 = vmatprep.subr.bf16.mxu0 0
        %608 = vmatpush1.bf16.msra.mxu0 %v590
        %609 = vmatprep.subr.bf16.mxu0 0
        %610 = vmatpush1.bf16.msra.mxu0 %v591
        %611 = vmatprep.subr.bf16.mxu0 0
        %612 = vmatpush1.bf16.msra.mxu0 %v592
        %613 = vmatprep.subr.bf16.mxu0 0
        %614 = vmatpush1.bf16.msra.mxu0 %v593
        %615 = vmatprep.subr.bf16.mxu0 0
        %616 = vmatpush1.bf16.msra.mxu0 %v594
        %617 = vmatprep.subr.bf16.mxu0 0
        %618 = vmatpush1.bf16.msra.mxu0 %v595
        %619 = vmatprep.subr.bf16.mxu0 0
        %620 = vmatpush1.bf16.msra.mxu0 %v596
        %621 = vmatprep.subr.bf16.mxu0 0
        %622 = vmatpush1.bf16.msra.mxu0 0
        %623 = vmatprep.subr.bf16.mxu0 0
        %624 = vmatpush1.bf16.msra.mxu0 0
        %625 = vmatprep.subr.bf16.mxu0 0
        %626 = vmatpush1.bf16.msra.mxu0 0
        %627 = vmatprep.subr.bf16.mxu0 0
        %628 = vmatpush1.bf16.msra.mxu0 0
        %629 = vmatprep.subr.bf16.mxu0 0
        %630 = vmatpush1.bf16.msra.mxu0 0
        %631 = vmatprep.subr.bf16.mxu0 0
        %632 = vmatpush1.bf16.msra.mxu0 0
        %633 = vmatprep.subr.bf16.mxu0 0
        %634 = vmatpush1.bf16.msra.mxu0 0
        %635 = vmatprep.subr.bf16.mxu0 0
        %636 = vmatpush1.bf16.msra.mxu0 0
        %637 = vmatprep.mubr.bf16.mxu0 0
        %638 = vmatmul.mubr.bf16.gmra.mrb[0].mxu0 %v502
        %v639 = vpop.f32.mrb[0].mxu0
        %v640 = vadd.f32 %v555, %v639
        %v641 = vpop.f32.mrb[0].mxu0
        %v642 = vpop.f32.mrb[0].mxu0
        %v643 = vadd.f32 %v555, %v642
        %v644 = vpop.f32.mrb[0].mxu0
        %645 = vmatprep.mubr.bf16.mxu0 0
        %646 = vmatmul.mubr.bf16.gmra.mrb[0].mxu0 %v503
        %v647 = vpop.f32.mrb[0].mxu0
        %v648 = vadd.f32 %v555, %v647
        %v649 = vpop.f32.mrb[0].mxu0
        %v650 = vpop.f32.mrb[0].mxu0
        %v651 = vadd.f32 %v555, %v650
        %v652 = vpop.f32.mrb[0].mxu0
        %653 = vmatprep.mubr.bf16.mxu0 0
        %654 = vmatmul.mubr.bf16.gmra.mrb[0].mxu0 %v504
        %v655 = vpop.f32.mrb[0].mxu0
        %v656 = vadd.f32 %v555, %v655
        %v657 = vpop.f32.mrb[0].mxu0
        %v658 = vpop.f32.mrb[0].mxu0
        %v659 = vadd.f32 %v555, %v658
        %v660 = vpop.f32.mrb[0].mxu0
        %661 = vmatprep.mubr.bf16.mxu0 0
        %662 = vmatmul.mubr.bf16.gmra.mrb[0].mxu0 %v505
        %v663 = vpop.f32.mrb[0].mxu0
        %v664 = vadd.f32 %v555, %v663
        %v665 = vpop.f32.mrb[0].mxu0
        %v666 = vpop.f32.mrb[0].mxu0
        %v667 = vadd.f32 %v555, %v666
        %v668 = vpop.f32.mrb[0].mxu0
        %669 = vmatprep.mubr.bf16.mxu0 0
        %670 = vmatmul.mubr.bf16.gmra.mrb[0].mxu0 %v506
        %v671 = vpop.f32.mrb[0].mxu0
        %v672 = vadd.f32 %v555, %v671
        %v673 = vpop.f32.mrb[0].mxu0
        %v674 = vpop.f32.mrb[0].mxu0
        %v675 = vadd.f32 %v555, %v674
        %v676 = vpop.f32.mrb[0].mxu0
        %677 = vmatprep.mubr.bf16.mxu0 0
        %678 = vmatmul.mubr.bf16.gmra.mrb[0].mxu0 %v507
        %v679 = vpop.f32.mrb[0].mxu0
        %v680 = vadd.f32 %v555, %v679
        %v681 = vpop.f32.mrb[0].mxu0
        %v682 = vpop.f32.mrb[0].mxu0
        %v683 = vadd.f32 %v555, %v682
        %v684 = vpop.f32.mrb[0].mxu0
        %685 = vmatprep.mubr.bf16.mxu0 0
        %686 = vmatmul.mubr.bf16.gmra.mrb[0].mxu0 %v508
        %v687 = vpop.f32.mrb[0].mxu0
        %v688 = vadd.f32 %v555, %v687
        %v689 = vpop.f32.mrb[0].mxu0
        %v690 = vpop.f32.mrb[0].mxu0
        %v691 = vadd.f32 %v555, %v690
        %v692 = vpop.f32.mrb[0].mxu0
        %693 = vmatprep.mubr.bf16.mxu0 0
        %694 = vmatmul.mubr.bf16.gmra.mrb[0].mxu0 %v509
        %v695 = vpop.f32.mrb[0].mxu0
        %v696 = vadd.f32 %v555, %v695
        %v697 = vpop.f32.mrb[0].mxu0
        %v698 = vpop.f32.mrb[0].mxu0
        %v699 = vadd.f32 %v555, %v698
        %v700 = vpop.f32.mrb[0].mxu0
        %701 = vmatprep.mubr.bf16.mxu0 0
        %702 = vmatmul.mubr.bf16.gmra.mrb[0].mxu0 %v510
        %v703 = vpop.f32.mrb[0].mxu0
        %v704 = vadd.f32 %v555, %v703
        %v705 = vpop.f32.mrb[0].mxu0
        %v706 = vpop.f32.mrb[0].mxu0
        %v707 = vadd.f32 %v555, %v706
        %v708 = vpop.f32.mrb[0].mxu0
        %709 = vmatprep.mubr.bf16.mxu0 0
        %710 = vmatmul.mubr.bf16.gmra.mrb[0].mxu0 %v511
        %v711 = vpop.f32.mrb[0].mxu0
        %v712 = vadd.f32 %v555, %v711
        %v713 = vpop.f32.mrb[0].mxu0
        %v714 = vpop.f32.mrb[0].mxu0
        %v715 = vadd.f32 %v555, %v714
        %v716 = vpop.f32.mrb[0].mxu0
        %717 = vmatprep.mubr.bf16.mxu0 0
        %718 = vmatmul.mubr.bf16.gmra.mrb[0].mxu0 %v512
        %v719 = vpop.f32.mrb[0].mxu0
        %v720 = vadd.f32 %v555, %v719
        %v721 = vpop.f32.mrb[0].mxu0
        %v722 = vpop.f32.mrb[0].mxu0
        %v723 = vadd.f32 %v555, %v722
        %v724 = vpop.f32.mrb[0].mxu0
        %725 = vmatprep.mubr.bf16.mxu0 0
        %726 = vmatmul.mubr.bf16.gmra.mrb[0].mxu0 %v513
        %v727 = vpop.f32.mrb[0].mxu0
        %v728 = vadd.f32 %v555, %v727
        %v729 = vpop.f32.mrb[0].mxu0
        %v730 = vpop.f32.mrb[0].mxu0
        %v731 = vadd.f32 %v555, %v730
        %v732 = vpop.f32.mrb[0].mxu0
        %733 = vmatprep.mubr.bf16.mxu0 0
        %734 = vmatmul.mubr.bf16.gmra.mrb[0].mxu0 %v514
        %v735 = vpop.f32.mrb[0].mxu0
        %v736 = vadd.f32 %v555, %v735
        %v737 = vpop.f32.mrb[0].mxu0
        %v738 = vpop.f32.mrb[0].mxu0
        %v739 = vadd.f32 %v555, %v738
        %v740 = vpop.f32.mrb[0].mxu0
        %741 = vmatprep.mubr.bf16.mxu0 0
        %742 = vmatmul.mubr.bf16.gmra.mrb[0].mxu0 %v515
        %v743 = vpop.f32.mrb[0].mxu0
        %v744 = vadd.f32 %v555, %v743
        %v745 = vpop.f32.mrb[0].mxu0
        %v746 = vpop.f32.mrb[0].mxu0
        %v747 = vadd.f32 %v555, %v746
        %v748 = vpop.f32.mrb[0].mxu0
        %749 = vmatprep.mubr.bf16.mxu0 0
        %750 = vmatmul.mubr.bf16.gmra.mrb[0].mxu0 %v516
        %v751 = vpop.f32.mrb[0].mxu0
        %v752 = vadd.f32 %v555, %v751
        %v753 = vpop.f32.mrb[0].mxu0
        %v754 = vpop.f32.mrb[0].mxu0
        %v755 = vadd.f32 %v555, %v754
        %v756 = vpop.f32.mrb[0].mxu0
        %757 = vmatprep.mubr.bf16.mxu0 0
        %758 = vmatmul.mubr.bf16.gmra.mrb[0].mxu0 %v517
        %v759 = vpop.f32.mrb[0].mxu0
        %v760 = vadd.f32 %v555, %v759
        %v761 = vpop.f32.mrb[0].mxu0
        %v762 = vpop.f32.mrb[0].mxu0
        %v763 = vadd.f32 %v555, %v762
        %v764 = vpop.f32.mrb[0].mxu0
        %765 = vmatprep.mubr.bf16.mxu0 0
        %766 = vmatmul.mubr.bf16.gmra.mrb[0].mxu0 %v518
        %v767 = vpop.f32.mrb[0].mxu0
        %v768 = vadd.f32 %v555, %v767
        %v769 = vpop.f32.mrb[0].mxu0
        %v770 = vpop.f32.mrb[0].mxu0
        %v771 = vadd.f32 %v555, %v770
        %v772 = vpop.f32.mrb[0].mxu0
        %773 = vmatprep.mubr.bf16.mxu0 0
        %774 = vmatmul.mubr.bf16.gmra.mrb[0].mxu0 %v519
        %v775 = vpop.f32.mrb[0].mxu0
        %v776 = vadd.f32 %v555, %v775
        %v777 = vpop.f32.mrb[0].mxu0
        %v778 = vpop.f32.mrb[0].mxu0
        %v779 = vadd.f32 %v555, %v778
        %v780 = vpop.f32.mrb[0].mxu0
        %781 = vmatprep.mubr.bf16.mxu0 0
        %782 = vmatmul.mubr.bf16.gmra.mrb[0].mxu0 %v520
        %v783 = vpop.f32.mrb[0].mxu0
        %v784 = vadd.f32 %v555, %v783
        %v785 = vpop.f32.mrb[0].mxu0
        %v786 = vpop.f32.mrb[0].mxu0
        %v787 = vadd.f32 %v555, %v786
        %v788 = vpop.f32.mrb[0].mxu0
        %789 = vmatprep.mubr.bf16.mxu0 0
        %790 = vmatmul.mubr.bf16.gmra.mrb[0].mxu0 %v521
        %v791 = vpop.f32.mrb[0].mxu0
        %v792 = vadd.f32 %v555, %v791
        %v793 = vpop.f32.mrb[0].mxu0
        %v794 = vpop.f32.mrb[0].mxu0
        %v795 = vadd.f32 %v555, %v794
        %v796 = vpop.f32.mrb[0].mxu0
        %797 = vmatprep.mubr.bf16.mxu0 0
        %798 = vmatmul.mubr.bf16.gmra.mrb[0].mxu0 %v522
        %v799 = vpop.f32.mrb[0].mxu0
        %v800 = vadd.f32 %v555, %v799
        %v801 = vpop.f32.mrb[0].mxu0
        %v802 = vpop.f32.mrb[0].mxu0
        %v803 = vadd.f32 %v555, %v802
        %v804 = vpop.f32.mrb[0].mxu0
        %805 = vmatprep.mubr.bf16.mxu0 0
        %806 = vmatmul.mubr.bf16.gmra.mrb[0].mxu0 %v523
        %v807 = vpop.f32.mrb[0].mxu0
        %v808 = vadd.f32 %v555, %v807
        %v809 = vpop.f32.mrb[0].mxu0
        %v810 = vpop.f32.mrb[0].mxu0
        %v811 = vadd.f32 %v555, %v810
        %v812 = vpop.f32.mrb[0].mxu0
        %813 = vmatprep.mubr.bf16.mxu0 0
        %814 = vmatmul.mubr.bf16.gmra.mrb[0].mxu0 %v524
        %v815 = vpop.f32.mrb[0].mxu0
        %v816 = vadd.f32 %v555, %v815
        %v817 = vpop.f32.mrb[0].mxu0
        %v818 = vpop.f32.mrb[0].mxu0
        %v819 = vadd.f32 %v555, %v818
        %v820 = vpop.f32.mrb[0].mxu0
        %821 = vmatprep.mubr.bf16.mxu0 0
        %822 = vmatmul.mubr.bf16.gmra.mrb[0].mxu0 %v525
        %v823 = vpop.f32.mrb[0].mxu0
        %v824 = vadd.f32 %v555, %v823
        %v825 = vpop.f32.mrb[0].mxu0
        %v826 = vpop.f32.mrb[0].mxu0
        %v827 = vadd.f32 %v555, %v826
        %v828 = vpop.f32.mrb[0].mxu0
        %829 = vmatprep.mubr.bf16.mxu0 0
        %830 = vmatmul.mubr.bf16.gmra.mrb[0].mxu0 %v526
        %v831 = vpop.f32.mrb[0].mxu0
        %v832 = vadd.f32 %v555, %v831
        %v833 = vpop.f32.mrb[0].mxu0
        %v834 = vpop.f32.mrb[0].mxu0
        %v835 = vadd.f32 %v555, %v834
        %v836 = vpop.f32.mrb[0].mxu0
        %837 = vmatprep.mubr.bf16.mxu0 0
        %838 = vmatmul.mubr.bf16.gmra.mrb[0].mxu0 %v527
        %v839 = vpop.f32.mrb[0].mxu0
        %v840 = vadd.f32 %v555, %v839
        %v841 = vpop.f32.mrb[0].mxu0
        %v842 = vpop.f32.mrb[0].mxu0
        %v843 = vadd.f32 %v555, %v842
        %v844 = vpop.f32.mrb[0].mxu0
        %845 = vmatprep.mubr.bf16.mxu0 0
        %846 = vmatmul.mubr.bf16.gmra.mrb[0].mxu0 %v528
        %v847 = vpop.f32.mrb[0].mxu0
        %v848 = vadd.f32 %v555, %v847
        %v849 = vpop.f32.mrb[0].mxu0
        %v850 = vpop.f32.mrb[0].mxu0
        %v851 = vadd.f32 %v555, %v850
        %v852 = vpop.f32.mrb[0].mxu0
        %853 = vmatprep.mubr.bf16.mxu0 0
        %854 = vmatmul.mubr.bf16.gmra.mrb[0].mxu0 %v529
        %v855 = vpop.f32.mrb[0].mxu0
        %v856 = vadd.f32 %v555, %v855
        %v857 = vpop.f32.mrb[0].mxu0
        %v858 = vpop.f32.mrb[0].mxu0
        %v859 = vadd.f32 %v555, %v858
        %v860 = vpop.f32.mrb[0].mxu0
        %861 = vmatprep.mubr.bf16.mxu0 0
        %862 = vmatmul.mubr.bf16.gmra.mrb[0].mxu0 %v530
        %v863 = vpop.f32.mrb[0].mxu0
        %v864 = vadd.f32 %v555, %v863
        %v865 = vpop.f32.mrb[0].mxu0
        %v866 = vpop.f32.mrb[0].mxu0
        %v867 = vadd.f32 %v555, %v866
        %v868 = vpop.f32.mrb[0].mxu0
        %869 = vmatprep.mubr.bf16.mxu0 0
        %870 = vmatmul.mubr.bf16.gmra.mrb[0].mxu0 %v531
        %v871 = vpop.f32.mrb[0].mxu0
        %v872 = vadd.f32 %v555, %v871
        %v873 = vpop.f32.mrb[0].mxu0
        %v874 = vpop.f32.mrb[0].mxu0
        %v875 = vadd.f32 %v555, %v874
        %v876 = vpop.f32.mrb[0].mxu0
        %877 = vmatprep.mubr.bf16.mxu0 0
        %878 = vmatmul.mubr.bf16.gmra.mrb[0].mxu0 %v532
        %v879 = vpop.f32.mrb[0].mxu0
        %v880 = vadd.f32 %v555, %v879
        %v881 = vpop.f32.mrb[0].mxu0
        %v882 = vpop.f32.mrb[0].mxu0
        %v883 = vadd.f32 %v555, %v882
        %v884 = vpop.f32.mrb[0].mxu0
        %885 = vmatprep.mubr.bf16.mxu0 0
        %886 = vmatmul.mubr.bf16.gmra.mrb[0].mxu0 %v533
        %v887 = vpop.f32.mrb[0].mxu0
        %v888 = vadd.f32 %v555, %v887
        %v889 = vpop.f32.mrb[0].mxu0
        %v890 = vpop.f32.mrb[0].mxu0
        %v891 = vpop.f32.mrb[0].mxu0
        %892 = vdwg.mxu0
        %v893 = vpack.c.bf16 %v643, %v640
        %v894 = vpack.c.bf16 %v651, %v648
        %v895 = vpack.c.bf16 %v659, %v656
        %v896 = vpack.c.bf16 %v667, %v664
        %v897 = vpack.c.bf16 %v675, %v672
        %v898 = vpack.c.bf16 %v683, %v680
        %v899 = vpack.c.bf16 %v691, %v688
        %v900 = vpack.c.bf16 %v699, %v696
        %v901 = vpack.c.bf16 %v707, %v704
        %v902 = vpack.c.bf16 %v715, %v712
        %v903 = vpack.c.bf16 %v723, %v720
        %v904 = vpack.c.bf16 %v731, %v728
        %v905 = vpack.c.bf16 %v739, %v736
        %v906 = vpack.c.bf16 %v747, %v744
        %v907 = vpack.c.bf16 %v755, %v752
        %v908 = vpack.c.bf16 %v763, %v760
        %v909 = vpack.c.bf16 %v771, %v768
        %v910 = vpack.c.bf16 %v779, %v776
        %v911 = vpack.c.bf16 %v787, %v784
        %v912 = vpack.c.bf16 %v795, %v792
        %v913 = vpack.c.bf16 %v803, %v800
        %v914 = vpack.c.bf16 %v811, %v808
        %v915 = vpack.c.bf16 %v819, %v816
        %v916 = vpack.c.bf16 %v827, %v824
        %v917 = vpack.c.bf16 %v835, %v832
        %v918 = vpack.c.bf16 %v843, %v840
        %v919 = vpack.c.bf16 %v851, %v848
        %v920 = vpack.c.bf16 %v859, %v856
        %v921 = vpack.c.bf16 %v867, %v864
        %v922 = vpack.c.bf16 %v875, %v872
        %v923 = vpack.c.bf16 %v883, %v880
        %v924 = vpack.c.bf16 %v888, %v888
        %v925 = vmax.bf16 %v893, 0
        %v926 = vmax.bf16 %v894, 0
        %v927 = vmax.bf16 %v895, 0
        %v928 = vmax.bf16 %v896, 0
        %v929 = vmax.bf16 %v897, 0
        %v930 = vmax.bf16 %v898, 0
        %v931 = vmax.bf16 %v899, 0
        %v932 = vmax.bf16 %v900, 0
        %v933 = vmax.bf16 %v901, 0
        %v934 = vmax.bf16 %v902, 0
        %v935 = vmax.bf16 %v903, 0
        %v936 = vmax.bf16 %v904, 0
        %v937 = vmax.bf16 %v905, 0
        %v938 = vmax.bf16 %v906, 0
        %v939 = vmax.bf16 %v907, 0
        %v940 = vmax.bf16 %v908, 0
        %v941 = vmax.bf16 %v909, 0
        %v942 = vmax.bf16 %v910, 0
        %v943 = vmax.bf16 %v911, 0
        %v944 = vmax.bf16 %v912, 0
        %v945 = vmax.bf16 %v913, 0
        %v946 = vmax.bf16 %v914, 0
        %v947 = vmax.bf16 %v915, 0
        %v948 = vmax.bf16 %v916, 0
        %v949 = vmax.bf16 %v917, 0
        %v950 = vmax.bf16 %v918, 0
        %v951 = vmax.bf16 %v919, 0
        %v952 = vmax.bf16 %v920, 0
        %v953 = vmax.bf16 %v921, 0
        %v954 = vmax.bf16 %v922, 0
        %v955 = vmax.bf16 %v923, 0
        %v956 = vmax.bf16 %v924, 0
        %v957 = vld [vmem:[#allocation2] sm:$0xf]
        %v958 = vld [vmem:[#allocation2 + $0x4] sm:$0xf]
        %v959 = vld [vmem:[#allocation2 + $0x8] sm:$0xf]
        %v960 = vld [vmem:[#allocation2 + $0xc] sm:$0xf]
        %v961 = vld [vmem:[#allocation2 + $0x10] sm:$0xf]
        %v962 = vld [vmem:[#allocation2 + $0x14] sm:$0xf]
        %v963 = vld [vmem:[#allocation2 + $0x18] sm:$0xf]
        %v964 = vld [vmem:[#allocation2 + $0x1c] sm:$0xf]
        %v965 = vld [vmem:[#allocation2 + $0x20] sm:$0xf]
        %v966 = vld [vmem:[#allocation2 + $0x24] sm:$0xf]
        %v967 = vld [vmem:[#allocation2 + $0x28] sm:$0xf]
        %v968 = vld [vmem:[#allocation2 + $0x2c] sm:$0xf]
        %v969 = vld [vmem:[#allocation2 + $0x30] sm:$0xf]
        %v970 = vld [vmem:[#allocation2 + $0x34] sm:$0xf]
        %v971 = vld [vmem:[#allocation2 + $0x38] sm:$0xf]
        %v972 = vld [vmem:[#allocation2 + $0x3c] sm:$0xf]
        %v973 = vld [vmem:[%s5] sm:$0x1]
        %v975 = vlaneseq
        %v976 = vshrl.u32 %v975, 7
        %v977 = vsub.s32 0, %v976
        %v978 = vrot.slane %v973, %v977
        %v996 = vunpack.c.l.b16 %v957
        %v997 = vunpack.c.l.b16 %v958
        %v998 = vunpack.c.l.b16 %v959
        %v999 = vunpack.c.l.b16 %v960
        %v1000 = vunpack.c.l.b16 %v961
        %v1001 = vunpack.c.l.b16 %v962
        %v1002 = vunpack.c.l.b16 %v963
        %v1003 = vunpack.c.l.b16 %v964
        %v1004 = vunpack.c.l.b16 %v965
        %v1005 = vunpack.c.l.b16 %v966
        %v1006 = vunpack.c.l.b16 %v967
        %v1007 = vunpack.c.l.b16 %v968
        %v1008 = vunpack.c.l.b16 %v969
        %v1009 = vunpack.c.l.b16 %v970
        %v1010 = vunpack.c.l.b16 %v971
        %v1011 = vunpack.c.l.b16 %v972
        %v1012 = vpack.c.b16 %v997, %v996
        %v1013 = vpack.c.b16 %v999, %v998
        %v1014 = vpack.c.b16 %v1001, %v1000
        %v1015 = vpack.c.b16 %v1003, %v1002
        %v1016 = vpack.c.b16 %v1005, %v1004
        %v1017 = vpack.c.b16 %v1007, %v1006
        %v1018 = vpack.c.b16 %v1009, %v1008
        %v1019 = vpack.c.b16 %v1011, %v1010
        %1028 = vmatprep.subr.bf16.mxu0 0
        %1029 = vmatpush1.bf16.msra.mxu0 %v1012
        %1030 = vmatprep.subr.bf16.mxu0 0
        %1031 = vmatpush1.bf16.msra.mxu0 %v1013
        %1032 = vmatprep.subr.bf16.mxu0 0
        %1033 = vmatpush1.bf16.msra.mxu0 %v1014
        %1034 = vmatprep.subr.bf16.mxu0 0
        %1035 = vmatpush1.bf16.msra.mxu0 %v1015
        %1036 = vmatprep.subr.bf16.mxu0 0
        %1037 = vmatpush1.bf16.msra.mxu0 %v1016
        %1038 = vmatprep.subr.bf16.mxu0 0
        %1039 = vmatpush1.bf16.msra.mxu0 %v1017
        %1040 = vmatprep.subr.bf16.mxu0 0
        %1041 = vmatpush1.bf16.msra.mxu0 %v1018
        %1042 = vmatprep.subr.bf16.mxu0 0
        %1043 = vmatpush1.bf16.msra.mxu0 %v1019
        %1044 = vmatprep.subr.bf16.mxu0 0
        %1045 = vmatpush1.bf16.msra.mxu0 0
        %1046 = vmatprep.subr.bf16.mxu0 0
        %1047 = vmatpush1.bf16.msra.mxu0 0
        %1048 = vmatprep.subr.bf16.mxu0 0
        %1049 = vmatpush1.bf16.msra.mxu0 0
        %1050 = vmatprep.subr.bf16.mxu0 0
        %1051 = vmatpush1.bf16.msra.mxu0 0
        %1052 = vmatprep.subr.bf16.mxu0 0
        %1053 = vmatpush1.bf16.msra.mxu0 0
        %1054 = vmatprep.subr.bf16.mxu0 0
        %1055 = vmatpush1.bf16.msra.mxu0 0
        %1056 = vmatprep.subr.bf16.mxu0 0
        %1057 = vmatpush1.bf16.msra.mxu0 0
        %1058 = vmatprep.subr.bf16.mxu0 0
        %1059 = vmatpush1.bf16.msra.mxu0 0
        %1060 = vmatprep.mubr.bf16.mxu0 0
        %1061 = vmatmul.mubr.bf16.gmra.mrb[0].mxu0 %v925
        %v1062 = vpop.f32.mrb[0].mxu0
        %v1063 = vadd.f32 %v978, %v1062
        %v1064 = vpop.f32.mrb[0].mxu0
        %v1065 = vpop.f32.mrb[0].mxu0
        %v1066 = vadd.f32 %v978, %v1065
        %v1067 = vpop.f32.mrb[0].mxu0
        %1068 = vmatprep.mubr.bf16.mxu0 0
        %1069 = vmatmul.mubr.bf16.gmra.mrb[0].mxu0 %v926
        %v1070 = vpop.f32.mrb[0].mxu0
        %v1071 = vadd.f32 %v978, %v1070
        %v1072 = vpop.f32.mrb[0].mxu0
        %v1073 = vpop.f32.mrb[0].mxu0
        %v1074 = vadd.f32 %v978, %v1073
        %v1075 = vpop.f32.mrb[0].mxu0
        %1076 = vmatprep.mubr.bf16.mxu0 0
        %1077 = vmatmul.mubr.bf16.gmra.mrb[0].mxu0 %v927
        %v1078 = vpop.f32.mrb[0].mxu0
        %v1079 = vadd.f32 %v978, %v1078
        %v1080 = vpop.f32.mrb[0].mxu0
        %v1081 = vpop.f32.mrb[0].mxu0
        %v1082 = vadd.f32 %v978, %v1081
        %v1083 = vpop.f32.mrb[0].mxu0
        %1084 = vmatprep.mubr.bf16.mxu0 0
        %1085 = vmatmul.mubr.bf16.gmra.mrb[0].mxu0 %v928
        %v1086 = vpop.f32.mrb[0].mxu0
        %v1087 = vadd.f32 %v978, %v1086
        %v1088 = vpop.f32.mrb[0].mxu0
        %v1089 = vpop.f32.mrb[0].mxu0
        %v1090 = vadd.f32 %v978, %v1089
        %v1091 = vpop.f32.mrb[0].mxu0
        %1092 = vmatprep.mubr.bf16.mxu0 0
        %1093 = vmatmul.mubr.bf16.gmra.mrb[0].mxu0 %v929
        %v1094 = vpop.f32.mrb[0].mxu0
        %v1095 = vadd.f32 %v978, %v1094
        %v1096 = vpop.f32.mrb[0].mxu0
        %v1097 = vpop.f32.mrb[0].mxu0
        %v1098 = vadd.f32 %v978, %v1097
        %v1099 = vpop.f32.mrb[0].mxu0
        %1100 = vmatprep.mubr.bf16.mxu0 0
        %1101 = vmatmul.mubr.bf16.gmra.mrb[0].mxu0 %v930
        %v1102 = vpop.f32.mrb[0].mxu0
        %v1103 = vadd.f32 %v978, %v1102
        %v1104 = vpop.f32.mrb[0].mxu0
        %v1105 = vpop.f32.mrb[0].mxu0
        %v1106 = vadd.f32 %v978, %v1105
        %v1107 = vpop.f32.mrb[0].mxu0
        %1108 = vmatprep.mubr.bf16.mxu0 0
        %1109 = vmatmul.mubr.bf16.gmra.mrb[0].mxu0 %v931
        %v1110 = vpop.f32.mrb[0].mxu0
        %v1111 = vadd.f32 %v978, %v1110
        %v1112 = vpop.f32.mrb[0].mxu0
        %v1113 = vpop.f32.mrb[0].mxu0
        %v1114 = vadd.f32 %v978, %v1113
        %v1115 = vpop.f32.mrb[0].mxu0
        %1116 = vmatprep.mubr.bf16.mxu0 0
        %1117 = vmatmul.mubr.bf16.gmra.mrb[0].mxu0 %v932
        %v1118 = vpop.f32.mrb[0].mxu0
        %v1119 = vadd.f32 %v978, %v1118
        %v1120 = vpop.f32.mrb[0].mxu0
        %v1121 = vpop.f32.mrb[0].mxu0
        %v1122 = vadd.f32 %v978, %v1121
        %v1123 = vpop.f32.mrb[0].mxu0
        %1124 = vmatprep.mubr.bf16.mxu0 0
        %1125 = vmatmul.mubr.bf16.gmra.mrb[0].mxu0 %v933
        %v1126 = vpop.f32.mrb[0].mxu0
        %v1127 = vadd.f32 %v978, %v1126
        %v1128 = vpop.f32.mrb[0].mxu0
        %v1129 = vpop.f32.mrb[0].mxu0
        %v1130 = vadd.f32 %v978, %v1129
        %v1131 = vpop.f32.mrb[0].mxu0
        %1132 = vmatprep.mubr.bf16.mxu0 0
        %1133 = vmatmul.mubr.bf16.gmra.mrb[0].mxu0 %v934
        %v1134 = vpop.f32.mrb[0].mxu0
        %v1135 = vadd.f32 %v978, %v1134
        %v1136 = vpop.f32.mrb[0].mxu0
        %v1137 = vpop.f32.mrb[0].mxu0
        %v1138 = vadd.f32 %v978, %v1137
        %v1139 = vpop.f32.mrb[0].mxu0
        %1140 = vmatprep.mubr.bf16.mxu0 0
        %1141 = vmatmul.mubr.bf16.gmra.mrb[0].mxu0 %v935
        %v1142 = vpop.f32.mrb[0].mxu0
        %v1143 = vadd.f32 %v978, %v1142
        %v1144 = vpop.f32.mrb[0].mxu0
        %v1145 = vpop.f32.mrb[0].mxu0
        %v1146 = vadd.f32 %v978, %v1145
        %v1147 = vpop.f32.mrb[0].mxu0
        %1148 = vmatprep.mubr.bf16.mxu0 0
        %1149 = vmatmul.mubr.bf16.gmra.mrb[0].mxu0 %v936
        %v1150 = vpop.f32.mrb[0].mxu0
        %v1151 = vadd.f32 %v978, %v1150
        %v1152 = vpop.f32.mrb[0].mxu0
        %v1153 = vpop.f32.mrb[0].mxu0
        %v1154 = vadd.f32 %v978, %v1153
        %v1155 = vpop.f32.mrb[0].mxu0
        %1156 = vmatprep.mubr.bf16.mxu0 0
        %1157 = vmatmul.mubr.bf16.gmra.mrb[0].mxu0 %v937
        %v1158 = vpop.f32.mrb[0].mxu0
        %v1159 = vadd.f32 %v978, %v1158
        %v1160 = vpop.f32.mrb[0].mxu0
        %v1161 = vpop.f32.mrb[0].mxu0
        %v1162 = vadd.f32 %v978, %v1161
        %v1163 = vpop.f32.mrb[0].mxu0
        %1164 = vmatprep.mubr.bf16.mxu0 0
        %1165 = vmatmul.mubr.bf16.gmra.mrb[0].mxu0 %v938
        %v1166 = vpop.f32.mrb[0].mxu0
        %v1167 = vadd.f32 %v978, %v1166
        %v1168 = vpop.f32.mrb[0].mxu0
        %v1169 = vpop.f32.mrb[0].mxu0
        %v1170 = vadd.f32 %v978, %v1169
        %v1171 = vpop.f32.mrb[0].mxu0
        %1172 = vmatprep.mubr.bf16.mxu0 0
        %1173 = vmatmul.mubr.bf16.gmra.mrb[0].mxu0 %v939
        %v1174 = vpop.f32.mrb[0].mxu0
        %v1175 = vadd.f32 %v978, %v1174
        %v1176 = vpop.f32.mrb[0].mxu0
        %v1177 = vpop.f32.mrb[0].mxu0
        %v1178 = vadd.f32 %v978, %v1177
        %v1179 = vpop.f32.mrb[0].mxu0
        %1180 = vmatprep.mubr.bf16.mxu0 0
        %1181 = vmatmul.mubr.bf16.gmra.mrb[0].mxu0 %v940
        %v1182 = vpop.f32.mrb[0].mxu0
        %v1183 = vadd.f32 %v978, %v1182
        %v1184 = vpop.f32.mrb[0].mxu0
        %v1185 = vpop.f32.mrb[0].mxu0
        %v1186 = vadd.f32 %v978, %v1185
        %v1187 = vpop.f32.mrb[0].mxu0
        %1188 = vmatprep.mubr.bf16.mxu0 0
        %1189 = vmatmul.mubr.bf16.gmra.mrb[0].mxu0 %v941
        %v1190 = vpop.f32.mrb[0].mxu0
        %v1191 = vadd.f32 %v978, %v1190
        %v1192 = vpop.f32.mrb[0].mxu0
        %v1193 = vpop.f32.mrb[0].mxu0
        %v1194 = vadd.f32 %v978, %v1193
        %v1195 = vpop.f32.mrb[0].mxu0
        %1196 = vmatprep.mubr.bf16.mxu0 0
        %1197 = vmatmul.mubr.bf16.gmra.mrb[0].mxu0 %v942
        %v1198 = vpop.f32.mrb[0].mxu0
        %v1199 = vadd.f32 %v978, %v1198
        %v1200 = vpop.f32.mrb[0].mxu0
        %v1201 = vpop.f32.mrb[0].mxu0
        %v1202 = vadd.f32 %v978, %v1201
        %v1203 = vpop.f32.mrb[0].mxu0
        %1204 = vmatprep.mubr.bf16.mxu0 0
        %1205 = vmatmul.mubr.bf16.gmra.mrb[0].mxu0 %v943
        %v1206 = vpop.f32.mrb[0].mxu0
        %v1207 = vadd.f32 %v978, %v1206
        %v1208 = vpop.f32.mrb[0].mxu0
        %v1209 = vpop.f32.mrb[0].mxu0
        %v1210 = vadd.f32 %v978, %v1209
        %v1211 = vpop.f32.mrb[0].mxu0
        %1212 = vmatprep.mubr.bf16.mxu0 0
        %1213 = vmatmul.mubr.bf16.gmra.mrb[0].mxu0 %v944
        %v1214 = vpop.f32.mrb[0].mxu0
        %v1215 = vadd.f32 %v978, %v1214
        %v1216 = vpop.f32.mrb[0].mxu0
        %v1217 = vpop.f32.mrb[0].mxu0
        %v1218 = vadd.f32 %v978, %v1217
        %v1219 = vpop.f32.mrb[0].mxu0
        %1220 = vmatprep.mubr.bf16.mxu0 0
        %1221 = vmatmul.mubr.bf16.gmra.mrb[0].mxu0 %v945
        %v1222 = vpop.f32.mrb[0].mxu0
        %v1223 = vadd.f32 %v978, %v1222
        %v1224 = vpop.f32.mrb[0].mxu0
        %v1225 = vpop.f32.mrb[0].mxu0
        %v1226 = vadd.f32 %v978, %v1225
        %v1227 = vpop.f32.mrb[0].mxu0
        %1228 = vmatprep.mubr.bf16.mxu0 0
        %1229 = vmatmul.mubr.bf16.gmra.mrb[0].mxu0 %v946
        %v1230 = vpop.f32.mrb[0].mxu0
        %v1231 = vadd.f32 %v978, %v1230
        %v1232 = vpop.f32.mrb[0].mxu0
        %v1233 = vpop.f32.mrb[0].mxu0
        %v1234 = vadd.f32 %v978, %v1233
        %v1235 = vpop.f32.mrb[0].mxu0
        %1236 = vmatprep.mubr.bf16.mxu0 0
        %1237 = vmatmul.mubr.bf16.gmra.mrb[0].mxu0 %v947
        %v1238 = vpop.f32.mrb[0].mxu0
        %v1239 = vadd.f32 %v978, %v1238
        %v1240 = vpop.f32.mrb[0].mxu0
        %v1241 = vpop.f32.mrb[0].mxu0
        %v1242 = vadd.f32 %v978, %v1241
        %v1243 = vpop.f32.mrb[0].mxu0
        %1244 = vmatprep.mubr.bf16.mxu0 0
        %1245 = vmatmul.mubr.bf16.gmra.mrb[0].mxu0 %v948
        %v1246 = vpop.f32.mrb[0].mxu0
        %v1247 = vadd.f32 %v978, %v1246
        %v1248 = vpop.f32.mrb[0].mxu0
        %v1249 = vpop.f32.mrb[0].mxu0
        %v1250 = vadd.f32 %v978, %v1249
        %v1251 = vpop.f32.mrb[0].mxu0
        %1252 = vmatprep.mubr.bf16.mxu0 0
        %1253 = vmatmul.mubr.bf16.gmra.mrb[0].mxu0 %v949
        %v1254 = vpop.f32.mrb[0].mxu0
        %v1255 = vadd.f32 %v978, %v1254
        %v1256 = vpop.f32.mrb[0].mxu0
        %v1257 = vpop.f32.mrb[0].mxu0
        %v1258 = vadd.f32 %v978, %v1257
        %v1259 = vpop.f32.mrb[0].mxu0
        %1260 = vmatprep.mubr.bf16.mxu0 0
        %1261 = vmatmul.mubr.bf16.gmra.mrb[0].mxu0 %v950
        %v1262 = vpop.f32.mrb[0].mxu0
        %v1263 = vadd.f32 %v978, %v1262
        %v1264 = vpop.f32.mrb[0].mxu0
        %v1265 = vpop.f32.mrb[0].mxu0
        %v1266 = vadd.f32 %v978, %v1265
        %v1267 = vpop.f32.mrb[0].mxu0
        %1268 = vmatprep.mubr.bf16.mxu0 0
        %1269 = vmatmul.mubr.bf16.gmra.mrb[0].mxu0 %v951
        %v1270 = vpop.f32.mrb[0].mxu0
        %v1271 = vadd.f32 %v978, %v1270
        %v1272 = vpop.f32.mrb[0].mxu0
        %v1273 = vpop.f32.mrb[0].mxu0
        %v1274 = vadd.f32 %v978, %v1273
        %v1275 = vpop.f32.mrb[0].mxu0
        %1276 = vmatprep.mubr.bf16.mxu0 0
        %1277 = vmatmul.mubr.bf16.gmra.mrb[0].mxu0 %v952
        %v1278 = vpop.f32.mrb[0].mxu0
        %v1279 = vadd.f32 %v978, %v1278
        %v1280 = vpop.f32.mrb[0].mxu0
        %v1281 = vpop.f32.mrb[0].mxu0
        %v1282 = vadd.f32 %v978, %v1281
        %v1283 = vpop.f32.mrb[0].mxu0
        %1284 = vmatprep.mubr.bf16.mxu0 0
        %1285 = vmatmul.mubr.bf16.gmra.mrb[0].mxu0 %v953
        %v1286 = vpop.f32.mrb[0].mxu0
        %v1287 = vadd.f32 %v978, %v1286
        %v1288 = vpop.f32.mrb[0].mxu0
        %v1289 = vpop.f32.mrb[0].mxu0
        %v1290 = vadd.f32 %v978, %v1289
        %v1291 = vpop.f32.mrb[0].mxu0
        %1292 = vmatprep.mubr.bf16.mxu0 0
        %1293 = vmatmul.mubr.bf16.gmra.mrb[0].mxu0 %v954
        %v1294 = vpop.f32.mrb[0].mxu0
        %v1295 = vadd.f32 %v978, %v1294
        %v1296 = vpop.f32.mrb[0].mxu0
        %v1297 = vpop.f32.mrb[0].mxu0
        %v1298 = vadd.f32 %v978, %v1297
        %v1299 = vpop.f32.mrb[0].mxu0
        %1300 = vmatprep.mubr.bf16.mxu0 0
        %1301 = vmatmul.mubr.bf16.gmra.mrb[0].mxu0 %v955
        %v1302 = vpop.f32.mrb[0].mxu0
        %v1303 = vadd.f32 %v978, %v1302
        %v1304 = vpop.f32.mrb[0].mxu0
        %v1305 = vpop.f32.mrb[0].mxu0
        %v1306 = vadd.f32 %v978, %v1305
        %v1307 = vpop.f32.mrb[0].mxu0
        %1308 = vmatprep.mubr.bf16.mxu0 0
        %1309 = vmatmul.mubr.bf16.gmra.mrb[0].mxu0 %v956
        %v1310 = vpop.f32.mrb[0].mxu0
        %v1311 = vadd.f32 %v978, %v1310
        %v1312 = vpop.f32.mrb[0].mxu0
        %v1313 = vpop.f32.mrb[0].mxu0
        %v1314 = vpop.f32.mrb[0].mxu0
        %1315 = vdwg.mxu0
        %v1316 = vpack.c.bf16 %v1066, %v1063
        %v1317 = vpack.c.bf16 %v1074, %v1071
        %v1318 = vpack.c.bf16 %v1082, %v1079
        %v1319 = vpack.c.bf16 %v1090, %v1087
        %v1320 = vpack.c.bf16 %v1098, %v1095
        %v1321 = vpack.c.bf16 %v1106, %v1103
        %v1322 = vpack.c.bf16 %v1114, %v1111
        %v1323 = vpack.c.bf16 %v1122, %v1119
        %v1324 = vpack.c.bf16 %v1130, %v1127
        %v1325 = vpack.c.bf16 %v1138, %v1135
        %v1326 = vpack.c.bf16 %v1146, %v1143
        %v1327 = vpack.c.bf16 %v1154, %v1151
        %v1328 = vpack.c.bf16 %v1162, %v1159
        %v1329 = vpack.c.bf16 %v1170, %v1167
        %v1330 = vpack.c.bf16 %v1178, %v1175
        %v1331 = vpack.c.bf16 %v1186, %v1183
        %v1332 = vpack.c.bf16 %v1194, %v1191
        %v1333 = vpack.c.bf16 %v1202, %v1199
        %v1334 = vpack.c.bf16 %v1210, %v1207
        %v1335 = vpack.c.bf16 %v1218, %v1215
        %v1336 = vpack.c.bf16 %v1226, %v1223
        %v1337 = vpack.c.bf16 %v1234, %v1231
        %v1338 = vpack.c.bf16 %v1242, %v1239
        %v1339 = vpack.c.bf16 %v1250, %v1247
        %v1340 = vpack.c.bf16 %v1258, %v1255
        %v1341 = vpack.c.bf16 %v1266, %v1263
        %v1342 = vpack.c.bf16 %v1274, %v1271
        %v1343 = vpack.c.bf16 %v1282, %v1279
        %v1344 = vpack.c.bf16 %v1290, %v1287
        %v1345 = vpack.c.bf16 %v1298, %v1295
        %v1346 = vpack.c.bf16 %v1306, %v1303
        %v1347 = vpack.c.bf16 %v1311, %v1311
        %v1348 = vmax.bf16 %v1316, 0
        %v1349 = vmax.bf16 %v1317, 0
        %v1350 = vmax.bf16 %v1318, 0
        %v1351 = vmax.bf16 %v1319, 0
        %v1352 = vmax.bf16 %v1320, 0
        %v1353 = vmax.bf16 %v1321, 0
        %v1354 = vmax.bf16 %v1322, 0
        %v1355 = vmax.bf16 %v1323, 0
        %v1356 = vmax.bf16 %v1324, 0
        %v1357 = vmax.bf16 %v1325, 0
        %v1358 = vmax.bf16 %v1326, 0
        %v1359 = vmax.bf16 %v1327, 0
        %v1360 = vmax.bf16 %v1328, 0
        %v1361 = vmax.bf16 %v1329, 0
        %v1362 = vmax.bf16 %v1330, 0
        %v1363 = vmax.bf16 %v1331, 0
        %v1364 = vmax.bf16 %v1332, 0
        %v1365 = vmax.bf16 %v1333, 0
        %v1366 = vmax.bf16 %v1334, 0
        %v1367 = vmax.bf16 %v1335, 0
        %v1368 = vmax.bf16 %v1336, 0
        %v1369 = vmax.bf16 %v1337, 0
        %v1370 = vmax.bf16 %v1338, 0
        %v1371 = vmax.bf16 %v1339, 0
        %v1372 = vmax.bf16 %v1340, 0
        %v1373 = vmax.bf16 %v1341, 0
        %v1374 = vmax.bf16 %v1342, 0
        %v1375 = vmax.bf16 %v1343, 0
        %v1376 = vmax.bf16 %v1344, 0
        %v1377 = vmax.bf16 %v1345, 0
        %v1378 = vmax.bf16 %v1346, 0
        %v1379 = vmax.bf16 %v1347, 0
        %v1380 = vld [vmem:[%s6] sm:$0xf]
        %v1381 = vld [vmem:[%s6 + $0x4] sm:$0xf]
        %v1382 = vld [vmem:[%s6 + $0x8] sm:$0xf]
        %v1383 = vld [vmem:[%s6 + $0xc] sm:$0xf]
        %v1384 = vld [vmem:[%s6 + $0x10] sm:$0xf]
        %v1385 = vld [vmem:[%s6 + $0x14] sm:$0xf]
        %v1386 = vld [vmem:[%s6 + $0x18] sm:$0xf]
        %v1387 = vld [vmem:[%s6 + $0x1c] sm:$0xf]
        %v1388 = vld [vmem:[%s6 + $0x20] sm:$0xf]
        %v1389 = vld [vmem:[%s6 + $0x24] sm:$0xf]
        %v1390 = vld [vmem:[%s6 + $0x28] sm:$0xf]
        %v1391 = vld [vmem:[%s6 + $0x2c] sm:$0xf]
        %v1392 = vld [vmem:[%s6 + $0x30] sm:$0xf]
        %v1393 = vld [vmem:[%s6 + $0x34] sm:$0xf]
        %v1394 = vld [vmem:[%s6 + $0x38] sm:$0xf]
        %v1395 = vld [vmem:[%s6 + $0x3c] sm:$0xf]
        %v1396 = vld [vmem:[%s7] sm:$0x1]
        %v1398 = vlaneseq
        %v1399 = vshrl.u32 %v1398, 7
        %v1400 = vsub.s32 0, %v1399
        %v1401 = vrot.slane %v1396, %v1400
        %v1419 = vunpack.c.l.b16 %v1380
        %v1420 = vunpack.c.l.b16 %v1381
        %v1421 = vunpack.c.l.b16 %v1382
        %v1422 = vunpack.c.l.b16 %v1383
        %v1423 = vunpack.c.l.b16 %v1384
        %v1424 = vunpack.c.l.b16 %v1385
        %v1425 = vunpack.c.l.b16 %v1386
        %v1426 = vunpack.c.l.b16 %v1387
        %v1427 = vunpack.c.l.b16 %v1388
        %v1428 = vunpack.c.l.b16 %v1389
        %v1429 = vunpack.c.l.b16 %v1390
        %v1430 = vunpack.c.l.b16 %v1391
        %v1431 = vunpack.c.l.b16 %v1392
        %v1432 = vunpack.c.l.b16 %v1393
        %v1433 = vunpack.c.l.b16 %v1394
        %v1434 = vunpack.c.l.b16 %v1395
        %v1435 = vpack.c.b16 %v1420, %v1419
        %v1436 = vpack.c.b16 %v1422, %v1421
        %v1437 = vpack.c.b16 %v1424, %v1423
        %v1438 = vpack.c.b16 %v1426, %v1425
        %v1439 = vpack.c.b16 %v1428, %v1427
        %v1440 = vpack.c.b16 %v1430, %v1429
        %v1441 = vpack.c.b16 %v1432, %v1431
        %v1442 = vpack.c.b16 %v1434, %v1433
        %1451 = vmatprep.subr.bf16.mxu0 0
        %1452 = vmatpush1.bf16.msra.mxu0 %v1435
        %1453 = vmatprep.subr.bf16.mxu0 0
        %1454 = vmatpush1.bf16.msra.mxu0 %v1436
        %1455 = vmatprep.subr.bf16.mxu0 0
        %1456 = vmatpush1.bf16.msra.mxu0 %v1437
        %1457 = vmatprep.subr.bf16.mxu0 0
        %1458 = vmatpush1.bf16.msra.mxu0 %v1438
        %1459 = vmatprep.subr.bf16.mxu0 0
        %1460 = vmatpush1.bf16.msra.mxu0 %v1439
        %1461 = vmatprep.subr.bf16.mxu0 0
        %1462 = vmatpush1.bf16.msra.mxu0 %v1440
        %1463 = vmatprep.subr.bf16.mxu0 0
        %1464 = vmatpush1.bf16.msra.mxu0 %v1441
        %1465 = vmatprep.subr.bf16.mxu0 0
        %1466 = vmatpush1.bf16.msra.mxu0 %v1442
        %1467 = vmatprep.subr.bf16.mxu0 0
        %1468 = vmatpush1.bf16.msra.mxu0 0
        %1469 = vmatprep.subr.bf16.mxu0 0
        %1470 = vmatpush1.bf16.msra.mxu0 0
        %1471 = vmatprep.subr.bf16.mxu0 0
        %1472 = vmatpush1.bf16.msra.mxu0 0
        %1473 = vmatprep.subr.bf16.mxu0 0
        %1474 = vmatpush1.bf16.msra.mxu0 0
        %1475 = vmatprep.subr.bf16.mxu0 0
        %1476 = vmatpush1.bf16.msra.mxu0 0
        %1477 = vmatprep.subr.bf16.mxu0 0
        %1478 = vmatpush1.bf16.msra.mxu0 0
        %1479 = vmatprep.subr.bf16.mxu0 0
        %1480 = vmatpush1.bf16.msra.mxu0 0
        %1481 = vmatprep.subr.bf16.mxu0 0
        %1482 = vmatpush1.bf16.msra.mxu0 0
        %1483 = vmatprep.mubr.bf16.mxu0 0
        %1484 = vmatmul.mubr.bf16.gmra.mrb[0].mxu0 %v1348
        %v1485 = vpop.f32.mrb[0].mxu0
        %v1486 = vadd.f32 %v1401, %v1485
        %v1487 = vpop.f32.mrb[0].mxu0
        %v1488 = vpop.f32.mrb[0].mxu0
        %v1489 = vadd.f32 %v1401, %v1488
        %v1490 = vpop.f32.mrb[0].mxu0
        %1491 = vmatprep.mubr.bf16.mxu0 0
        %1492 = vmatmul.mubr.bf16.gmra.mrb[0].mxu0 %v1349
        %v1493 = vpop.f32.mrb[0].mxu0
        %v1494 = vadd.f32 %v1401, %v1493
        %v1495 = vpop.f32.mrb[0].mxu0
        %v1496 = vpop.f32.mrb[0].mxu0
        %v1497 = vadd.f32 %v1401, %v1496
        %v1498 = vpop.f32.mrb[0].mxu0
        %1499 = vmatprep.mubr.bf16.mxu0 0
        %1500 = vmatmul.mubr.bf16.gmra.mrb[0].mxu0 %v1350
        %v1501 = vpop.f32.mrb[0].mxu0
        %v1502 = vadd.f32 %v1401, %v1501
        %v1503 = vpop.f32.mrb[0].mxu0
        %v1504 = vpop.f32.mrb[0].mxu0
        %v1505 = vadd.f32 %v1401, %v1504
        %v1506 = vpop.f32.mrb[0].mxu0
        %1507 = vmatprep.mubr.bf16.mxu0 0
        %1508 = vmatmul.mubr.bf16.gmra.mrb[0].mxu0 %v1351
        %v1509 = vpop.f32.mrb[0].mxu0
        %v1510 = vadd.f32 %v1401, %v1509
        %v1511 = vpop.f32.mrb[0].mxu0
        %v1512 = vpop.f32.mrb[0].mxu0
        %v1513 = vadd.f32 %v1401, %v1512
        %v1514 = vpop.f32.mrb[0].mxu0
        %1515 = vmatprep.mubr.bf16.mxu0 0
        %1516 = vmatmul.mubr.bf16.gmra.mrb[0].mxu0 %v1352
        %v1517 = vpop.f32.mrb[0].mxu0
        %v1518 = vadd.f32 %v1401, %v1517
        %v1519 = vpop.f32.mrb[0].mxu0
        %v1520 = vpop.f32.mrb[0].mxu0
        %v1521 = vadd.f32 %v1401, %v1520
        %v1522 = vpop.f32.mrb[0].mxu0
        %1523 = vmatprep.mubr.bf16.mxu0 0
        %1524 = vmatmul.mubr.bf16.gmra.mrb[0].mxu0 %v1353
        %v1525 = vpop.f32.mrb[0].mxu0
        %v1526 = vadd.f32 %v1401, %v1525
        %v1527 = vpop.f32.mrb[0].mxu0
        %v1528 = vpop.f32.mrb[0].mxu0
        %v1529 = vadd.f32 %v1401, %v1528
        %v1530 = vpop.f32.mrb[0].mxu0
        %1531 = vmatprep.mubr.bf16.mxu0 0
        %1532 = vmatmul.mubr.bf16.gmra.mrb[0].mxu0 %v1354
        %v1533 = vpop.f32.mrb[0].mxu0
        %v1534 = vadd.f32 %v1401, %v1533
        %v1535 = vpop.f32.mrb[0].mxu0
        %v1536 = vpop.f32.mrb[0].mxu0
        %v1537 = vadd.f32 %v1401, %v1536
        %v1538 = vpop.f32.mrb[0].mxu0
        %1539 = vmatprep.mubr.bf16.mxu0 0
        %1540 = vmatmul.mubr.bf16.gmra.mrb[0].mxu0 %v1355
        %v1541 = vpop.f32.mrb[0].mxu0
        %v1542 = vadd.f32 %v1401, %v1541
        %v1543 = vpop.f32.mrb[0].mxu0
        %v1544 = vpop.f32.mrb[0].mxu0
        %v1545 = vadd.f32 %v1401, %v1544
        %v1546 = vpop.f32.mrb[0].mxu0
        %1547 = vmatprep.mubr.bf16.mxu0 0
        %1548 = vmatmul.mubr.bf16.gmra.mrb[0].mxu0 %v1356
        %v1549 = vpop.f32.mrb[0].mxu0
        %v1550 = vadd.f32 %v1401, %v1549
        %v1551 = vpop.f32.mrb[0].mxu0
        %v1552 = vpop.f32.mrb[0].mxu0
        %v1553 = vadd.f32 %v1401, %v1552
        %v1554 = vpop.f32.mrb[0].mxu0
        %1555 = vmatprep.mubr.bf16.mxu0 0
        %1556 = vmatmul.mubr.bf16.gmra.mrb[0].mxu0 %v1357
        %v1557 = vpop.f32.mrb[0].mxu0
        %v1558 = vadd.f32 %v1401, %v1557
        %v1559 = vpop.f32.mrb[0].mxu0
        %v1560 = vpop.f32.mrb[0].mxu0
        %v1561 = vadd.f32 %v1401, %v1560
        %v1562 = vpop.f32.mrb[0].mxu0
        %1563 = vmatprep.mubr.bf16.mxu0 0
        %1564 = vmatmul.mubr.bf16.gmra.mrb[0].mxu0 %v1358
        %v1565 = vpop.f32.mrb[0].mxu0
        %v1566 = vadd.f32 %v1401, %v1565
        %v1567 = vpop.f32.mrb[0].mxu0
        %v1568 = vpop.f32.mrb[0].mxu0
        %v1569 = vadd.f32 %v1401, %v1568
        %v1570 = vpop.f32.mrb[0].mxu0
        %1571 = vmatprep.mubr.bf16.mxu0 0
        %1572 = vmatmul.mubr.bf16.gmra.mrb[0].mxu0 %v1359
        %v1573 = vpop.f32.mrb[0].mxu0
        %v1574 = vadd.f32 %v1401, %v1573
        %v1575 = vpop.f32.mrb[0].mxu0
        %v1576 = vpop.f32.mrb[0].mxu0
        %v1577 = vadd.f32 %v1401, %v1576
        %v1578 = vpop.f32.mrb[0].mxu0
        %1579 = vmatprep.mubr.bf16.mxu0 0
        %1580 = vmatmul.mubr.bf16.gmra.mrb[0].mxu0 %v1360
        %v1581 = vpop.f32.mrb[0].mxu0
        %v1582 = vadd.f32 %v1401, %v1581
        %v1583 = vpop.f32.mrb[0].mxu0
        %v1584 = vpop.f32.mrb[0].mxu0
        %v1585 = vadd.f32 %v1401, %v1584
        %v1586 = vpop.f32.mrb[0].mxu0
        %1587 = vmatprep.mubr.bf16.mxu0 0
        %1588 = vmatmul.mubr.bf16.gmra.mrb[0].mxu0 %v1361
        %v1589 = vpop.f32.mrb[0].mxu0
        %v1590 = vadd.f32 %v1401, %v1589
        %v1591 = vpop.f32.mrb[0].mxu0
        %v1592 = vpop.f32.mrb[0].mxu0
        %v1593 = vadd.f32 %v1401, %v1592
        %v1594 = vpop.f32.mrb[0].mxu0
        %1595 = vmatprep.mubr.bf16.mxu0 0
        %1596 = vmatmul.mubr.bf16.gmra.mrb[0].mxu0 %v1362
        %v1597 = vpop.f32.mrb[0].mxu0
        %v1598 = vadd.f32 %v1401, %v1597
        %v1599 = vpop.f32.mrb[0].mxu0
        %v1600 = vpop.f32.mrb[0].mxu0
        %v1601 = vadd.f32 %v1401, %v1600
        %v1602 = vpop.f32.mrb[0].mxu0
        %1603 = vmatprep.mubr.bf16.mxu0 0
        %1604 = vmatmul.mubr.bf16.gmra.mrb[0].mxu0 %v1363
        %v1605 = vpop.f32.mrb[0].mxu0
        %v1606 = vadd.f32 %v1401, %v1605
        %v1607 = vpop.f32.mrb[0].mxu0
        %v1608 = vpop.f32.mrb[0].mxu0
        %v1609 = vadd.f32 %v1401, %v1608
        %v1610 = vpop.f32.mrb[0].mxu0
        %1611 = vmatprep.mubr.bf16.mxu0 0
        %1612 = vmatmul.mubr.bf16.gmra.mrb[0].mxu0 %v1364
        %v1613 = vpop.f32.mrb[0].mxu0
        %v1614 = vadd.f32 %v1401, %v1613
        %v1615 = vpop.f32.mrb[0].mxu0
        %v1616 = vpop.f32.mrb[0].mxu0
        %v1617 = vadd.f32 %v1401, %v1616
        %v1618 = vpop.f32.mrb[0].mxu0
        %1619 = vmatprep.mubr.bf16.mxu0 0
        %1620 = vmatmul.mubr.bf16.gmra.mrb[0].mxu0 %v1365
        %v1621 = vpop.f32.mrb[0].mxu0
        %v1622 = vadd.f32 %v1401, %v1621
        %v1623 = vpop.f32.mrb[0].mxu0
        %v1624 = vpop.f32.mrb[0].mxu0
        %v1625 = vadd.f32 %v1401, %v1624
        %v1626 = vpop.f32.mrb[0].mxu0
        %1627 = vmatprep.mubr.bf16.mxu0 0
        %1628 = vmatmul.mubr.bf16.gmra.mrb[0].mxu0 %v1366
        %v1629 = vpop.f32.mrb[0].mxu0
        %v1630 = vadd.f32 %v1401, %v1629
        %v1631 = vpop.f32.mrb[0].mxu0
        %v1632 = vpop.f32.mrb[0].mxu0
        %v1633 = vadd.f32 %v1401, %v1632
        %v1634 = vpop.f32.mrb[0].mxu0
        %1635 = vmatprep.mubr.bf16.mxu0 0
        %1636 = vmatmul.mubr.bf16.gmra.mrb[0].mxu0 %v1367
        %v1637 = vpop.f32.mrb[0].mxu0
        %v1638 = vadd.f32 %v1401, %v1637
        %v1639 = vpop.f32.mrb[0].mxu0
        %v1640 = vpop.f32.mrb[0].mxu0
        %v1641 = vadd.f32 %v1401, %v1640
        %v1642 = vpop.f32.mrb[0].mxu0
        %1643 = vmatprep.mubr.bf16.mxu0 0
        %1644 = vmatmul.mubr.bf16.gmra.mrb[0].mxu0 %v1368
        %v1645 = vpop.f32.mrb[0].mxu0
        %v1646 = vadd.f32 %v1401, %v1645
        %v1647 = vpop.f32.mrb[0].mxu0
        %v1648 = vpop.f32.mrb[0].mxu0
        %v1649 = vadd.f32 %v1401, %v1648
        %v1650 = vpop.f32.mrb[0].mxu0
        %1651 = vmatprep.mubr.bf16.mxu0 0
        %1652 = vmatmul.mubr.bf16.gmra.mrb[0].mxu0 %v1369
        %v1653 = vpop.f32.mrb[0].mxu0
        %v1654 = vadd.f32 %v1401, %v1653
        %v1655 = vpop.f32.mrb[0].mxu0
        %v1656 = vpop.f32.mrb[0].mxu0
        %v1657 = vadd.f32 %v1401, %v1656
        %v1658 = vpop.f32.mrb[0].mxu0
        %1659 = vmatprep.mubr.bf16.mxu0 0
        %1660 = vmatmul.mubr.bf16.gmra.mrb[0].mxu0 %v1370
        %v1661 = vpop.f32.mrb[0].mxu0
        %v1662 = vadd.f32 %v1401, %v1661
        %v1663 = vpop.f32.mrb[0].mxu0
        %v1664 = vpop.f32.mrb[0].mxu0
        %v1665 = vadd.f32 %v1401, %v1664
        %v1666 = vpop.f32.mrb[0].mxu0
        %1667 = vmatprep.mubr.bf16.mxu0 0
        %1668 = vmatmul.mubr.bf16.gmra.mrb[0].mxu0 %v1371
        %v1669 = vpop.f32.mrb[0].mxu0
        %v1670 = vadd.f32 %v1401, %v1669
        %v1671 = vpop.f32.mrb[0].mxu0
        %v1672 = vpop.f32.mrb[0].mxu0
        %v1673 = vadd.f32 %v1401, %v1672
        %v1674 = vpop.f32.mrb[0].mxu0
        %1675 = vmatprep.mubr.bf16.mxu0 0
        %1676 = vmatmul.mubr.bf16.gmra.mrb[0].mxu0 %v1372
        %v1677 = vpop.f32.mrb[0].mxu0
        %v1678 = vadd.f32 %v1401, %v1677
        %v1679 = vpop.f32.mrb[0].mxu0
        %v1680 = vpop.f32.mrb[0].mxu0
        %v1681 = vadd.f32 %v1401, %v1680
        %v1682 = vpop.f32.mrb[0].mxu0
        %1683 = vmatprep.mubr.bf16.mxu0 0
        %1684 = vmatmul.mubr.bf16.gmra.mrb[0].mxu0 %v1373
        %v1685 = vpop.f32.mrb[0].mxu0
        %v1686 = vadd.f32 %v1401, %v1685
        %v1687 = vpop.f32.mrb[0].mxu0
        %v1688 = vpop.f32.mrb[0].mxu0
        %v1689 = vadd.f32 %v1401, %v1688
        %v1690 = vpop.f32.mrb[0].mxu0
        %1691 = vmatprep.mubr.bf16.mxu0 0
        %1692 = vmatmul.mubr.bf16.gmra.mrb[0].mxu0 %v1374
        %v1693 = vpop.f32.mrb[0].mxu0
        %v1694 = vadd.f32 %v1401, %v1693
        %v1695 = vpop.f32.mrb[0].mxu0
        %v1696 = vpop.f32.mrb[0].mxu0
        %v1697 = vadd.f32 %v1401, %v1696
        %v1698 = vpop.f32.mrb[0].mxu0
        %1699 = vmatprep.mubr.bf16.mxu0 0
        %1700 = vmatmul.mubr.bf16.gmra.mrb[0].mxu0 %v1375
        %v1701 = vpop.f32.mrb[0].mxu0
        %v1702 = vadd.f32 %v1401, %v1701
        %v1703 = vpop.f32.mrb[0].mxu0
        %v1704 = vpop.f32.mrb[0].mxu0
        %v1705 = vadd.f32 %v1401, %v1704
        %v1706 = vpop.f32.mrb[0].mxu0
        %1707 = vmatprep.mubr.bf16.mxu0 0
        %1708 = vmatmul.mubr.bf16.gmra.mrb[0].mxu0 %v1376
        %v1709 = vpop.f32.mrb[0].mxu0
        %v1710 = vadd.f32 %v1401, %v1709
        %v1711 = vpop.f32.mrb[0].mxu0
        %v1712 = vpop.f32.mrb[0].mxu0
        %v1713 = vadd.f32 %v1401, %v1712
        %v1714 = vpop.f32.mrb[0].mxu0
        %1715 = vmatprep.mubr.bf16.mxu0 0
        %1716 = vmatmul.mubr.bf16.gmra.mrb[0].mxu0 %v1377
        %v1717 = vpop.f32.mrb[0].mxu0
        %v1718 = vadd.f32 %v1401, %v1717
        %v1719 = vpop.f32.mrb[0].mxu0
        %v1720 = vpop.f32.mrb[0].mxu0
        %v1721 = vadd.f32 %v1401, %v1720
        %v1722 = vpop.f32.mrb[0].mxu0
        %1723 = vmatprep.mubr.bf16.mxu0 0
        %1724 = vmatmul.mubr.bf16.gmra.mrb[0].mxu0 %v1378
        %v1725 = vpop.f32.mrb[0].mxu0
        %v1726 = vadd.f32 %v1401, %v1725
        %v1727 = vpop.f32.mrb[0].mxu0
        %v1728 = vpop.f32.mrb[0].mxu0
        %v1729 = vadd.f32 %v1401, %v1728
        %v1730 = vpop.f32.mrb[0].mxu0
        %1731 = vmatprep.mubr.bf16.mxu0 0
        %1732 = vmatmul.mubr.bf16.gmra.mrb[0].mxu0 %v1379
        %v1733 = vpop.f32.mrb[0].mxu0
        %v1734 = vadd.f32 %v1401, %v1733
        %v1735 = vpop.f32.mrb[0].mxu0
        %v1736 = vpop.f32.mrb[0].mxu0
        %v1737 = vpop.f32.mrb[0].mxu0
        %1738 = vdwg.mxu0
        %v1739 = vld [vmem:[%s8] sm:$0x1]
        %v1740 = vld [vmem:[%s9] sm:$0x1]
        %v1742 = vlaneseq
        %v1743 = vshrl.u32 %v1742, 7
        %v1744 = vsub.s32 0, %v1743
        %v1745 = vrot.slane %v1740, %v1744
        %v1747 = vmul.f32 %v1486, %v1745
        %v1748 = vmul.f32 %v1489, %v1745
        %v1749 = vmul.f32 %v1494, %v1745
        %v1750 = vmul.f32 %v1497, %v1745
        %v1751 = vmul.f32 %v1502, %v1745
        %v1752 = vmul.f32 %v1505, %v1745
        %v1753 = vmul.f32 %v1510, %v1745
        %v1754 = vmul.f32 %v1513, %v1745
        %v1755 = vmul.f32 %v1518, %v1745
        %v1756 = vmul.f32 %v1521, %v1745
        %v1757 = vmul.f32 %v1526, %v1745
        %v1758 = vmul.f32 %v1529, %v1745
        %v1759 = vmul.f32 %v1534, %v1745
        %v1760 = vmul.f32 %v1537, %v1745
        %v1761 = vmul.f32 %v1542, %v1745
        %v1762 = vmul.f32 %v1545, %v1745
        %v1763 = vmul.f32 %v1550, %v1745
        %v1764 = vmul.f32 %v1553, %v1745
        %v1765 = vmul.f32 %v1558, %v1745
        %v1766 = vmul.f32 %v1561, %v1745
        %v1767 = vmul.f32 %v1566, %v1745
        %v1768 = vmul.f32 %v1569, %v1745
        %v1769 = vmul.f32 %v1574, %v1745
        %v1770 = vmul.f32 %v1577, %v1745
        %v1771 = vmul.f32 %v1582, %v1745
        %v1772 = vmul.f32 %v1585, %v1745
        %v1773 = vmul.f32 %v1590, %v1745
        %v1774 = vmul.f32 %v1593, %v1745
        %v1775 = vmul.f32 %v1598, %v1745
        %v1776 = vmul.f32 %v1601, %v1745
        %v1777 = vmul.f32 %v1606, %v1745
        %v1778 = vmul.f32 %v1609, %v1745
        %v1779 = vmul.f32 %v1614, %v1745
        %v1780 = vmul.f32 %v1617, %v1745
        %v1781 = vmul.f32 %v1622, %v1745
        %v1782 = vmul.f32 %v1625, %v1745
        %v1783 = vmul.f32 %v1630, %v1745
        %v1784 = vmul.f32 %v1633, %v1745
        %v1785 = vmul.f32 %v1638, %v1745
        %v1786 = vmul.f32 %v1641, %v1745
        %v1787 = vmul.f32 %v1646, %v1745
        %v1788 = vmul.f32 %v1649, %v1745
        %v1789 = vmul.f32 %v1654, %v1745
        %v1790 = vmul.f32 %v1657, %v1745
        %v1791 = vmul.f32 %v1662, %v1745
        %v1792 = vmul.f32 %v1665, %v1745
        %v1793 = vmul.f32 %v1670, %v1745
        %v1794 = vmul.f32 %v1673, %v1745
        %v1795 = vmul.f32 %v1678, %v1745
        %v1796 = vmul.f32 %v1681, %v1745
        %v1797 = vmul.f32 %v1686, %v1745
        %v1798 = vmul.f32 %v1689, %v1745
        %v1799 = vmul.f32 %v1694, %v1745
        %v1800 = vmul.f32 %v1697, %v1745
        %v1801 = vmul.f32 %v1702, %v1745
        %v1802 = vmul.f32 %v1705, %v1745
        %v1803 = vmul.f32 %v1710, %v1745
        %v1804 = vmul.f32 %v1713, %v1745
        %v1805 = vmul.f32 %v1718, %v1745
        %v1806 = vmul.f32 %v1721, %v1745
        %v1807 = vmul.f32 %v1726, %v1745
        %v1808 = vmul.f32 %v1729, %v1745
        %v1809 = vmul.f32 %v1734, %v1745
        %v1811 = vlaneseq
        %v1812 = vshrl.u32 %v1811, 7
        %v1813 = vsub.s32 0, %v1812
        %v1814 = vrot.slane %v1739, %v1813
        %v1816 = vadd.f32 %v1814, %v1747
        %v1817 = vadd.f32 %v1814, %v1748
        %v1818 = vadd.f32 %v1814, %v1749
        %v1819 = vadd.f32 %v1814, %v1750
        %v1820 = vadd.f32 %v1814, %v1751
        %v1821 = vadd.f32 %v1814, %v1752
        %v1822 = vadd.f32 %v1814, %v1753
        %v1823 = vadd.f32 %v1814, %v1754
        %v1824 = vadd.f32 %v1814, %v1755
        %v1825 = vadd.f32 %v1814, %v1756
        %v1826 = vadd.f32 %v1814, %v1757
        %v1827 = vadd.f32 %v1814, %v1758
        %v1828 = vadd.f32 %v1814, %v1759
        %v1829 = vadd.f32 %v1814, %v1760
        %v1830 = vadd.f32 %v1814, %v1761
        %v1831 = vadd.f32 %v1814, %v1762
        %v1832 = vadd.f32 %v1814, %v1763
        %v1833 = vadd.f32 %v1814, %v1764
        %v1834 = vadd.f32 %v1814, %v1765
        %v1835 = vadd.f32 %v1814, %v1766
        %v1836 = vadd.f32 %v1814, %v1767
        %v1837 = vadd.f32 %v1814, %v1768
        %v1838 = vadd.f32 %v1814, %v1769
        %v1839 = vadd.f32 %v1814, %v1770
        %v1840 = vadd.f32 %v1814, %v1771
        %v1841 = vadd.f32 %v1814, %v1772
        %v1842 = vadd.f32 %v1814, %v1773
        %v1843 = vadd.f32 %v1814, %v1774
        %v1844 = vadd.f32 %v1814, %v1775
        %v1845 = vadd.f32 %v1814, %v1776
        %v1846 = vadd.f32 %v1814, %v1777
        %v1847 = vadd.f32 %v1814, %v1778
        %v1848 = vadd.f32 %v1814, %v1779
        %v1849 = vadd.f32 %v1814, %v1780
        %v1850 = vadd.f32 %v1814, %v1781
        %v1851 = vadd.f32 %v1814, %v1782
        %v1852 = vadd.f32 %v1814, %v1783
        %v1853 = vadd.f32 %v1814, %v1784
        %v1854 = vadd.f32 %v1814, %v1785
        %v1855 = vadd.f32 %v1814, %v1786
        %v1856 = vadd.f32 %v1814, %v1787
        %v1857 = vadd.f32 %v1814, %v1788
        %v1858 = vadd.f32 %v1814, %v1789
        %v1859 = vadd.f32 %v1814, %v1790
        %v1860 = vadd.f32 %v1814, %v1791
        %v1861 = vadd.f32 %v1814, %v1792
        %v1862 = vadd.f32 %v1814, %v1793
        %v1863 = vadd.f32 %v1814, %v1794
        %v1864 = vadd.f32 %v1814, %v1795
        %v1865 = vadd.f32 %v1814, %v1796
        %v1866 = vadd.f32 %v1814, %v1797
        %v1867 = vadd.f32 %v1814, %v1798
        %v1868 = vadd.f32 %v1814, %v1799
        %v1869 = vadd.f32 %v1814, %v1800
        %v1870 = vadd.f32 %v1814, %v1801
        %v1871 = vadd.f32 %v1814, %v1802
        %v1872 = vadd.f32 %v1814, %v1803
        %v1873 = vadd.f32 %v1814, %v1804
        %v1874 = vadd.f32 %v1814, %v1805
        %v1875 = vadd.f32 %v1814, %v1806
        %v1876 = vadd.f32 %v1814, %v1807
        %v1877 = vadd.f32 %v1814, %v1808
        %v1878 = vadd.f32 %v1814, %v1809
        %v1879 = vld [vmem:[%s427] sm:$0xff]
        %v1880 = vld [vmem:[%s427 + $0x8] sm:$0xff]
        %v1881 = vld [vmem:[%s427 + $0x10] sm:$0xff]
        %v1882 = vld [vmem:[%s427 + $0x18] sm:$0xff]
        %v1883 = vld [vmem:[%s427 + $0x20] sm:$0xff]
        %v1884 = vld [vmem:[%s427 + $0x28] sm:$0xff]
        %v1885 = vld [vmem:[%s427 + $0x30] sm:$0xff]
        %v1886 = vld [vmem:[%s427 + $0x38] sm:$0xff]
        %v1887 = vld [vmem:[%s427 + $0x40] sm:$0xff]
        %v1888 = vld [vmem:[%s427 + $0x48] sm:$0xff]
        %v1889 = vld [vmem:[%s427 + $0x50] sm:$0xff]
        %v1890 = vld [vmem:[%s427 + $0x58] sm:$0xff]
        %v1891 = vld [vmem:[%s427 + $0x60] sm:$0xff]
        %v1892 = vld [vmem:[%s427 + $0x68] sm:$0xff]
        %v1893 = vld [vmem:[%s427 + $0x70] sm:$0xff]
        %v1894 = vld [vmem:[%s427 + $0x78] sm:$0xff]
        %v1895 = vld [vmem:[%s427 + $0x80] sm:$0xff]
        %v1896 = vld [vmem:[%s427 + $0x88] sm:$0xff]
        %v1897 = vld [vmem:[%s427 + $0x90] sm:$0xff]
        %v1898 = vld [vmem:[%s427 + $0x98] sm:$0xff]
        %v1899 = vld [vmem:[%s427 + $0xa0] sm:$0xff]
        %v1900 = vld [vmem:[%s427 + $0xa8] sm:$0xff]
        %v1901 = vld [vmem:[%s427 + $0xb0] sm:$0xff]
        %v1902 = vld [vmem:[%s427 + $0xb8] sm:$0xff]
        %v1903 = vld [vmem:[%s427 + $0xc0] sm:$0xff]
        %v1904 = vld [vmem:[%s427 + $0xc8] sm:$0xff]
        %v1905 = vld [vmem:[%s427 + $0xd0] sm:$0xff]
        %v1906 = vld [vmem:[%s427 + $0xd8] sm:$0xff]
        %v1907 = vld [vmem:[%s427 + $0xe0] sm:$0xff]
        %v1908 = vld [vmem:[%s427 + $0xe8] sm:$0xff]
        %v1909 = vld [vmem:[%s427 + $0xf0] sm:$0xff]
        %v1910 = vld [vmem:[%s427 + $0xf8] sm:$0xff]
        %v1911 = vld [vmem:[%s427 + $0x100] sm:$0xff]
        %v1912 = vld [vmem:[%s427 + $0x108] sm:$0xff]
        %v1913 = vld [vmem:[%s427 + $0x110] sm:$0xff]
        %v1914 = vld [vmem:[%s427 + $0x118] sm:$0xff]
        %v1915 = vld [vmem:[%s427 + $0x120] sm:$0xff]
        %v1916 = vld [vmem:[%s427 + $0x128] sm:$0xff]
        %v1917 = vld [vmem:[%s427 + $0x130] sm:$0xff]
        %v1918 = vld [vmem:[%s427 + $0x138] sm:$0xff]
        %v1919 = vld [vmem:[%s427 + $0x140] sm:$0xff]
        %v1920 = vld [vmem:[%s427 + $0x148] sm:$0xff]
        %v1921 = vld [vmem:[%s427 + $0x150] sm:$0xff]
        %v1922 = vld [vmem:[%s427 + $0x158] sm:$0xff]
        %v1923 = vld [vmem:[%s427 + $0x160] sm:$0xff]
        %v1924 = vld [vmem:[%s427 + $0x168] sm:$0xff]
        %v1925 = vld [vmem:[%s427 + $0x170] sm:$0xff]
        %v1926 = vld [vmem:[%s427 + $0x178] sm:$0xff]
        %v1927 = vld [vmem:[%s427 + $0x180] sm:$0xff]
        %v1928 = vld [vmem:[%s427 + $0x188] sm:$0xff]
        %v1929 = vld [vmem:[%s427 + $0x190] sm:$0xff]
        %v1930 = vld [vmem:[%s427 + $0x198] sm:$0xff]
        %v1931 = vld [vmem:[%s427 + $0x1a0] sm:$0xff]
        %v1932 = vld [vmem:[%s427 + $0x1a8] sm:$0xff]
        %v1933 = vld [vmem:[%s427 + $0x1b0] sm:$0xff]
        %v1934 = vld [vmem:[%s427 + $0x1b8] sm:$0xff]
        %v1935 = vld [vmem:[%s427 + $0x1c0] sm:$0xff]
        %v1936 = vld [vmem:[%s427 + $0x1c8] sm:$0xff]
        %v1937 = vld [vmem:[%s427 + $0x1d0] sm:$0xff]
        %v1938 = vld [vmem:[%s427 + $0x1d8] sm:$0xff]
        %v1939 = vld [vmem:[%s427 + $0x1e0] sm:$0xff]
        %v1940 = vld [vmem:[%s427 + $0x1e8] sm:$0xff]
        %v1941 = vld [vmem:[%s427 + $0x1f0] sm:$0xff]
        %1943 = vset.pattern.permute.xlu0 0
        %1944 = vperm.xlu0 %1943, %v1879
        %v1945 = vpop.permute.xlu0 %1944
        %1948 = vset.pattern.permute.xlu0 0
        %1949 = vperm.xlu0 %1948, %v1880
        %v1950 = vpop.permute.xlu0 %1949
        %1953 = vset.pattern.permute.xlu0 0
        %1954 = vperm.xlu0 %1953, %v1881
        %v1955 = vpop.permute.xlu0 %1954
        %1958 = vset.pattern.permute.xlu0 0
        %1959 = vperm.xlu0 %1958, %v1882
        %v1960 = vpop.permute.xlu0 %1959
        %1963 = vset.pattern.permute.xlu0 0
        %1964 = vperm.xlu0 %1963, %v1883
        %v1965 = vpop.permute.xlu0 %1964
        %1968 = vset.pattern.permute.xlu0 0
        %1969 = vperm.xlu0 %1968, %v1884
        %v1970 = vpop.permute.xlu0 %1969
        %1973 = vset.pattern.permute.xlu0 0
        %1974 = vperm.xlu0 %1973, %v1885
        %v1975 = vpop.permute.xlu0 %1974
        %1978 = vset.pattern.permute.xlu0 0
        %1979 = vperm.xlu0 %1978, %v1886
        %v1980 = vpop.permute.xlu0 %1979
        %1983 = vset.pattern.permute.xlu0 0
        %1984 = vperm.xlu0 %1983, %v1887
        %v1985 = vpop.permute.xlu0 %1984
        %1988 = vset.pattern.permute.xlu0 0
        %1989 = vperm.xlu0 %1988, %v1888
        %v1990 = vpop.permute.xlu0 %1989
        %1993 = vset.pattern.permute.xlu0 0
        %1994 = vperm.xlu0 %1993, %v1889
        %v1995 = vpop.permute.xlu0 %1994
        %1998 = vset.pattern.permute.xlu0 0
        %1999 = vperm.xlu0 %1998, %v1890
        %v2000 = vpop.permute.xlu0 %1999
        %2003 = vset.pattern.permute.xlu0 0
        %2004 = vperm.xlu0 %2003, %v1891
        %v2005 = vpop.permute.xlu0 %2004
        %2008 = vset.pattern.permute.xlu0 0
        %2009 = vperm.xlu0 %2008, %v1892
        %v2010 = vpop.permute.xlu0 %2009
        %2013 = vset.pattern.permute.xlu0 0
        %2014 = vperm.xlu0 %2013, %v1893
        %v2015 = vpop.permute.xlu0 %2014
        %2018 = vset.pattern.permute.xlu0 0
        %2019 = vperm.xlu0 %2018, %v1894
        %v2020 = vpop.permute.xlu0 %2019
        %2023 = vset.pattern.permute.xlu0 0
        %2024 = vperm.xlu0 %2023, %v1895
        %v2025 = vpop.permute.xlu0 %2024
        %2028 = vset.pattern.permute.xlu0 0
        %2029 = vperm.xlu0 %2028, %v1896
        %v2030 = vpop.permute.xlu0 %2029
        %2033 = vset.pattern.permute.xlu0 0
        %2034 = vperm.xlu0 %2033, %v1897
        %v2035 = vpop.permute.xlu0 %2034
        %2038 = vset.pattern.permute.xlu0 0
        %2039 = vperm.xlu0 %2038, %v1898
        %v2040 = vpop.permute.xlu0 %2039
        %2043 = vset.pattern.permute.xlu0 0
        %2044 = vperm.xlu0 %2043, %v1899
        %v2045 = vpop.permute.xlu0 %2044
        %2048 = vset.pattern.permute.xlu0 0
        %2049 = vperm.xlu0 %2048, %v1900
        %v2050 = vpop.permute.xlu0 %2049
        %2053 = vset.pattern.permute.xlu0 0
        %2054 = vperm.xlu0 %2053, %v1901
        %v2055 = vpop.permute.xlu0 %2054
        %2058 = vset.pattern.permute.xlu0 0
        %2059 = vperm.xlu0 %2058, %v1902
        %v2060 = vpop.permute.xlu0 %2059
        %2063 = vset.pattern.permute.xlu0 0
        %2064 = vperm.xlu0 %2063, %v1903
        %v2065 = vpop.permute.xlu0 %2064
        %2068 = vset.pattern.permute.xlu0 0
        %2069 = vperm.xlu0 %2068, %v1904
        %v2070 = vpop.permute.xlu0 %2069
        %2073 = vset.pattern.permute.xlu0 0
        %2074 = vperm.xlu0 %2073, %v1905
        %v2075 = vpop.permute.xlu0 %2074
        %2078 = vset.pattern.permute.xlu0 0
        %2079 = vperm.xlu0 %2078, %v1906
        %v2080 = vpop.permute.xlu0 %2079
        %2083 = vset.pattern.permute.xlu0 0
        %2084 = vperm.xlu0 %2083, %v1907
        %v2085 = vpop.permute.xlu0 %2084
        %2088 = vset.pattern.permute.xlu0 0
        %2089 = vperm.xlu0 %2088, %v1908
        %v2090 = vpop.permute.xlu0 %2089
        %2093 = vset.pattern.permute.xlu0 0
        %2094 = vperm.xlu0 %2093, %v1909
        %v2095 = vpop.permute.xlu0 %2094
        %2098 = vset.pattern.permute.xlu0 0
        %2099 = vperm.xlu0 %2098, %v1910
        %v2100 = vpop.permute.xlu0 %2099
        %2103 = vset.pattern.permute.xlu0 0
        %2104 = vperm.xlu0 %2103, %v1911
        %v2105 = vpop.permute.xlu0 %2104
        %2108 = vset.pattern.permute.xlu0 0
        %2109 = vperm.xlu0 %2108, %v1912
        %v2110 = vpop.permute.xlu0 %2109
        %2113 = vset.pattern.permute.xlu0 0
        %2114 = vperm.xlu0 %2113, %v1913
        %v2115 = vpop.permute.xlu0 %2114
        %2118 = vset.pattern.permute.xlu0 0
        %2119 = vperm.xlu0 %2118, %v1914
        %v2120 = vpop.permute.xlu0 %2119
        %2123 = vset.pattern.permute.xlu0 0
        %2124 = vperm.xlu0 %2123, %v1915
        %v2125 = vpop.permute.xlu0 %2124
        %2128 = vset.pattern.permute.xlu0 0
        %2129 = vperm.xlu0 %2128, %v1916
        %v2130 = vpop.permute.xlu0 %2129
        %2133 = vset.pattern.permute.xlu0 0
        %2134 = vperm.xlu0 %2133, %v1917
        %v2135 = vpop.permute.xlu0 %2134
        %2138 = vset.pattern.permute.xlu0 0
        %2139 = vperm.xlu0 %2138, %v1918
        %v2140 = vpop.permute.xlu0 %2139
        %2143 = vset.pattern.permute.xlu0 0
        %2144 = vperm.xlu0 %2143, %v1919
        %v2145 = vpop.permute.xlu0 %2144
        %2148 = vset.pattern.permute.xlu0 0
        %2149 = vperm.xlu0 %2148, %v1920
        %v2150 = vpop.permute.xlu0 %2149
        %2153 = vset.pattern.permute.xlu0 0
        %2154 = vperm.xlu0 %2153, %v1921
        %v2155 = vpop.permute.xlu0 %2154
        %2158 = vset.pattern.permute.xlu0 0
        %2159 = vperm.xlu0 %2158, %v1922
        %v2160 = vpop.permute.xlu0 %2159
        %2163 = vset.pattern.permute.xlu0 0
        %2164 = vperm.xlu0 %2163, %v1923
        %v2165 = vpop.permute.xlu0 %2164
        %2168 = vset.pattern.permute.xlu0 0
        %2169 = vperm.xlu0 %2168, %v1924
        %v2170 = vpop.permute.xlu0 %2169
        %2173 = vset.pattern.permute.xlu0 0
        %2174 = vperm.xlu0 %2173, %v1925
        %v2175 = vpop.permute.xlu0 %2174
        %2178 = vset.pattern.permute.xlu0 0
        %2179 = vperm.xlu0 %2178, %v1926
        %v2180 = vpop.permute.xlu0 %2179
        %2183 = vset.pattern.permute.xlu0 0
        %2184 = vperm.xlu0 %2183, %v1927
        %v2185 = vpop.permute.xlu0 %2184
        %2188 = vset.pattern.permute.xlu0 0
        %2189 = vperm.xlu0 %2188, %v1928
        %v2190 = vpop.permute.xlu0 %2189
        %2193 = vset.pattern.permute.xlu0 0
        %2194 = vperm.xlu0 %2193, %v1929
        %v2195 = vpop.permute.xlu0 %2194
        %2198 = vset.pattern.permute.xlu0 0
        %2199 = vperm.xlu0 %2198, %v1930
        %v2200 = vpop.permute.xlu0 %2199
        %2203 = vset.pattern.permute.xlu0 0
        %2204 = vperm.xlu0 %2203, %v1931
        %v2205 = vpop.permute.xlu0 %2204
        %2208 = vset.pattern.permute.xlu0 0
        %2209 = vperm.xlu0 %2208, %v1932
        %v2210 = vpop.permute.xlu0 %2209
        %2213 = vset.pattern.permute.xlu0 0
        %2214 = vperm.xlu0 %2213, %v1933
        %v2215 = vpop.permute.xlu0 %2214
        %2218 = vset.pattern.permute.xlu0 0
        %2219 = vperm.xlu0 %2218, %v1934
        %v2220 = vpop.permute.xlu0 %2219
        %2223 = vset.pattern.permute.xlu0 0
        %2224 = vperm.xlu0 %2223, %v1935
        %v2225 = vpop.permute.xlu0 %2224
        %2228 = vset.pattern.permute.xlu0 0
        %2229 = vperm.xlu0 %2228, %v1936
        %v2230 = vpop.permute.xlu0 %2229
        %2233 = vset.pattern.permute.xlu0 0
        %2234 = vperm.xlu0 %2233, %v1937
        %v2235 = vpop.permute.xlu0 %2234
        %2238 = vset.pattern.permute.xlu0 0
        %2239 = vperm.xlu0 %2238, %v1938
        %v2240 = vpop.permute.xlu0 %2239
        %2243 = vset.pattern.permute.xlu0 0
        %2244 = vperm.xlu0 %2243, %v1939
        %v2245 = vpop.permute.xlu0 %2244
        %2248 = vset.pattern.permute.xlu0 0
        %2249 = vperm.xlu0 %2248, %v1940
        %v2250 = vpop.permute.xlu0 %2249
        %2253 = vset.pattern.permute.xlu0 0
        %2254 = vperm.xlu0 %2253, %v1941
        %v2255 = vpop.permute.xlu0 %2254
        %v2257 = vmul.f32 %v1816, %v1945
        %v2258 = vmul.f32 %v1817, %v1950
        %v2259 = vmul.f32 %v1818, %v1955
        %v2260 = vmul.f32 %v1819, %v1960
        %v2261 = vmul.f32 %v1820, %v1965
        %v2262 = vmul.f32 %v1821, %v1970
        %v2263 = vmul.f32 %v1822, %v1975
        %v2264 = vmul.f32 %v1823, %v1980
        %v2265 = vmul.f32 %v1824, %v1985
        %v2266 = vmul.f32 %v1825, %v1990
        %v2267 = vmul.f32 %v1826, %v1995
        %v2268 = vmul.f32 %v1827, %v2000
        %v2269 = vmul.f32 %v1828, %v2005
        %v2270 = vmul.f32 %v1829, %v2010
        %v2271 = vmul.f32 %v1830, %v2015
        %v2272 = vmul.f32 %v1831, %v2020
        %v2273 = vmul.f32 %v1832, %v2025
        %v2274 = vmul.f32 %v1833, %v2030
        %v2275 = vmul.f32 %v1834, %v2035
        %v2276 = vmul.f32 %v1835, %v2040
        %v2277 = vmul.f32 %v1836, %v2045
        %v2278 = vmul.f32 %v1837, %v2050
        %v2279 = vmul.f32 %v1838, %v2055
        %v2280 = vmul.f32 %v1839, %v2060
        %v2281 = vmul.f32 %v1840, %v2065
        %v2282 = vmul.f32 %v1841, %v2070
        %v2283 = vmul.f32 %v1842, %v2075
        %v2284 = vmul.f32 %v1843, %v2080
        %v2285 = vmul.f32 %v1844, %v2085
        %v2286 = vmul.f32 %v1845, %v2090
        %v2287 = vmul.f32 %v1846, %v2095
        %v2288 = vmul.f32 %v1847, %v2100
        %v2289 = vmul.f32 %v1848, %v2105
        %v2290 = vmul.f32 %v1849, %v2110
        %v2291 = vmul.f32 %v1850, %v2115
        %v2292 = vmul.f32 %v1851, %v2120
        %v2293 = vmul.f32 %v1852, %v2125
        %v2294 = vmul.f32 %v1853, %v2130
        %v2295 = vmul.f32 %v1854, %v2135
        %v2296 = vmul.f32 %v1855, %v2140
        %v2297 = vmul.f32 %v1856, %v2145
        %v2298 = vmul.f32 %v1857, %v2150
        %v2299 = vmul.f32 %v1858, %v2155
        %v2300 = vmul.f32 %v1859, %v2160
        %v2301 = vmul.f32 %v1860, %v2165
        %v2302 = vmul.f32 %v1861, %v2170
        %v2303 = vmul.f32 %v1862, %v2175
        %v2304 = vmul.f32 %v1863, %v2180
        %v2305 = vmul.f32 %v1864, %v2185
        %v2306 = vmul.f32 %v1865, %v2190
        %v2307 = vmul.f32 %v1866, %v2195
        %v2308 = vmul.f32 %v1867, %v2200
        %v2309 = vmul.f32 %v1868, %v2205
        %v2310 = vmul.f32 %v1869, %v2210
        %v2311 = vmul.f32 %v1870, %v2215
        %v2312 = vmul.f32 %v1871, %v2220
        %v2313 = vmul.f32 %v1872, %v2225
        %v2314 = vmul.f32 %v1873, %v2230
        %v2315 = vmul.f32 %v1874, %v2235
        %v2316 = vmul.f32 %v1875, %v2240
        %v2317 = vmul.f32 %v1876, %v2245
        %v2318 = vmul.f32 %v1877, %v2250
        %v2319 = vmul.f32 %v1878, %v2255
        %vm2320 = vcmask 23552
        %2321 = vst.msk [vmem:[%s404] sm:$0xff] %vm2320, %v2257
        %2322 = vst.msk [vmem:[%s404 + $0x8] sm:$0xff] %vm2320, %v2258
        %2323 = vst.msk [vmem:[%s404 + $0x10] sm:$0xff] %vm2320, %v2259
        %2324 = vst.msk [vmem:[%s404 + $0x18] sm:$0xff] %vm2320, %v2260
        %2325 = vst.msk [vmem:[%s404 + $0x20] sm:$0xff] %vm2320, %v2261
        %2326 = vst.msk [vmem:[%s404 + $0x28] sm:$0xff] %vm2320, %v2262
        %2327 = vst.msk [vmem:[%s404 + $0x30] sm:$0xff] %vm2320, %v2263
        %2328 = vst.msk [vmem:[%s404 + $0x38] sm:$0xff] %vm2320, %v2264
        %2329 = vst.msk [vmem:[%s404 + $0x40] sm:$0xff] %vm2320, %v2265
        %2330 = vst.msk [vmem:[%s404 + $0x48] sm:$0xff] %vm2320, %v2266
        %2331 = vst.msk [vmem:[%s404 + $0x50] sm:$0xff] %vm2320, %v2267
        %2332 = vst.msk [vmem:[%s404 + $0x58] sm:$0xff] %vm2320, %v2268
        %2333 = vst.msk [vmem:[%s404 + $0x60] sm:$0xff] %vm2320, %v2269
        %2334 = vst.msk [vmem:[%s404 + $0x68] sm:$0xff] %vm2320, %v2270
        %2335 = vst.msk [vmem:[%s404 + $0x70] sm:$0xff] %vm2320, %v2271
        %2336 = vst.msk [vmem:[%s404 + $0x78] sm:$0xff] %vm2320, %v2272
        %2337 = vst.msk [vmem:[%s404 + $0x80] sm:$0xff] %vm2320, %v2273
        %2338 = vst.msk [vmem:[%s404 + $0x88] sm:$0xff] %vm2320, %v2274
        %2339 = vst.msk [vmem:[%s404 + $0x90] sm:$0xff] %vm2320, %v2275
        %2340 = vst.msk [vmem:[%s404 + $0x98] sm:$0xff] %vm2320, %v2276
        %2341 = vst.msk [vmem:[%s404 + $0xa0] sm:$0xff] %vm2320, %v2277
        %2342 = vst.msk [vmem:[%s404 + $0xa8] sm:$0xff] %vm2320, %v2278
        %2343 = vst.msk [vmem:[%s404 + $0xb0] sm:$0xff] %vm2320, %v2279
        %2344 = vst.msk [vmem:[%s404 + $0xb8] sm:$0xff] %vm2320, %v2280
        %2345 = vst.msk [vmem:[%s404 + $0xc0] sm:$0xff] %vm2320, %v2281
        %2346 = vst.msk [vmem:[%s404 + $0xc8] sm:$0xff] %vm2320, %v2282
        %2347 = vst.msk [vmem:[%s404 + $0xd0] sm:$0xff] %vm2320, %v2283
        %2348 = vst.msk [vmem:[%s404 + $0xd8] sm:$0xff] %vm2320, %v2284
        %2349 = vst.msk [vmem:[%s404 + $0xe0] sm:$0xff] %vm2320, %v2285
        %2350 = vst.msk [vmem:[%s404 + $0xe8] sm:$0xff] %vm2320, %v2286
        %2351 = vst.msk [vmem:[%s404 + $0xf0] sm:$0xff] %vm2320, %v2287
        %2352 = vst.msk [vmem:[%s404 + $0xf8] sm:$0xff] %vm2320, %v2288
        %2353 = vst.msk [vmem:[%s404 + $0x100] sm:$0xff] %vm2320, %v2289
        %2354 = vst.msk [vmem:[%s404 + $0x108] sm:$0xff] %vm2320, %v2290
        %2355 = vst.msk [vmem:[%s404 + $0x110] sm:$0xff] %vm2320, %v2291
        %2356 = vst.msk [vmem:[%s404 + $0x118] sm:$0xff] %vm2320, %v2292
        %2357 = vst.msk [vmem:[%s404 + $0x120] sm:$0xff] %vm2320, %v2293
        %2358 = vst.msk [vmem:[%s404 + $0x128] sm:$0xff] %vm2320, %v2294
        %2359 = vst.msk [vmem:[%s404 + $0x130] sm:$0xff] %vm2320, %v2295
        %2360 = vst.msk [vmem:[%s404 + $0x138] sm:$0xff] %vm2320, %v2296
        %2361 = vst.msk [vmem:[%s404 + $0x140] sm:$0xff] %vm2320, %v2297
        %2362 = vst.msk [vmem:[%s404 + $0x148] sm:$0xff] %vm2320, %v2298
        %2363 = vst.msk [vmem:[%s404 + $0x150] sm:$0xff] %vm2320, %v2299
        %2364 = vst.msk [vmem:[%s404 + $0x158] sm:$0xff] %vm2320, %v2300
        %2365 = vst.msk [vmem:[%s404 + $0x160] sm:$0xff] %vm2320, %v2301
        %2366 = vst.msk [vmem:[%s404 + $0x168] sm:$0xff] %vm2320, %v2302
        %2367 = vst.msk [vmem:[%s404 + $0x170] sm:$0xff] %vm2320, %v2303
        %2368 = vst.msk [vmem:[%s404 + $0x178] sm:$0xff] %vm2320, %v2304
        %2369 = vst.msk [vmem:[%s404 + $0x180] sm:$0xff] %vm2320, %v2305
        %2370 = vst.msk [vmem:[%s404 + $0x188] sm:$0xff] %vm2320, %v2306
        %2371 = vst.msk [vmem:[%s404 + $0x190] sm:$0xff] %vm2320, %v2307
        %2372 = vst.msk [vmem:[%s404 + $0x198] sm:$0xff] %vm2320, %v2308
        %2373 = vst.msk [vmem:[%s404 + $0x1a0] sm:$0xff] %vm2320, %v2309
        %2374 = vst.msk [vmem:[%s404 + $0x1a8] sm:$0xff] %vm2320, %v2310
        %2375 = vst.msk [vmem:[%s404 + $0x1b0] sm:$0xff] %vm2320, %v2311
        %2376 = vst.msk [vmem:[%s404 + $0x1b8] sm:$0xff] %vm2320, %v2312
        %2377 = vst.msk [vmem:[%s404 + $0x1c0] sm:$0xff] %vm2320, %v2313
        %2378 = vst.msk [vmem:[%s404 + $0x1c8] sm:$0xff] %vm2320, %v2314
        %2379 = vst.msk [vmem:[%s404 + $0x1d0] sm:$0xff] %vm2320, %v2315
        %2380 = vst.msk [vmem:[%s404 + $0x1d8] sm:$0xff] %vm2320, %v2316
        %2381 = vst.msk [vmem:[%s404 + $0x1e0] sm:$0xff] %vm2320, %v2317
        %2382 = vst.msk [vmem:[%s404 + $0x1e8] sm:$0xff] %vm2320, %v2318
        %2383 = vst.msk [vmem:[%s404 + $0x1f0] sm:$0xff] %vm2320, %v2319
        %s2384 = sand.u32 %s250, 1
        %s2385 = sand.u32 %s250, 1
        %s2386 = smul.addr %s2385, 504
        %s2387 = scalar_lea.vmem [#allocation4], %s2386
        // Predicated region
        $region65: #{tpu_custom_call.1} parent=59 // pred_check
          %p2388 = pneg %p260
        $region66: #{tpu_custom_call.1} parent=59 // pred_check_branch
          %2390 = sbr.rel (%p2388) target = $region68
        $region67: #{tpu_custom_call.1} parent=59 // pred_region
          %s2391 = smul.u32 63, %s22
          %s2392 = ssub.s32 125, %s2391
          %p2393 = scmp.lt.s32.totalorder %s2392, 63
          %s2394 = scalar_select %p2393, %s2392, 63
          %s2395 = smul.u32 128, %s2394
          %p2396 = scmp.ne.s32.totalorder 0, %s2395
          %s2397 = smul.addr %s2391, 8
          %s2398 = scalar_lea.vmem %s10, %s2397
          // Predicated region
          $region69: #{tpu_custom_call.1} parent=67 // pred_check
            %p2399 = pneg %p2396
          $region70: #{tpu_custom_call.1} parent=67 // pred_check_branch
            %2401 = sbr.rel (%p2399) target = $region72
          $region71: #{tpu_custom_call.1} parent=67 // pred_region
            // Predicated region
            $region73: #{tpu_custom_call.1} parent=71 // pred_check
              _
            $region74: #{tpu_custom_call.1} parent=71 // pred_check_branch
              %2403 = sbr.rel (0) target = $region76
            $region75: #{tpu_custom_call.1} parent=71 // pred_region
              // Predicated region
              $region95: #{tpu_custom_call.1} parent=75 // pred_check
                _
              $region96: #{tpu_custom_call.1} parent=75 // pred_check_branch
                %2577 = sbr.rel (0) target = $region98
              $region97: #{tpu_custom_call.1} parent=75 // pred_region
                %s2578 = sdiv.u32.pop %s2394, 63
                %s2579 = srem.u32.pop %s2394, 63
                // While loop
                $region99: #{tpu_custom_call.1} parent=97 // loop_pre_header
                  _
                $region100: #{tpu_custom_call.1} parent=97 // loop_header
                  %s2581 = sphi 0, %s2583
                  %p2582 = scmp.ge.s32.totalorder %s2581, %s2578
                  %s2586 = sphi 0, %s2717
                  %s2587 = sphi %s2387, %s2720
                  %s2588 = sphi %s2398, %s2721
                $region101: #{tpu_custom_call.1} parent=97 // loop_header_branch
                  %2585 = sbr.rel (%p2582) target = $region105
                $region102: #{tpu_custom_call.1} parent=97 // loop_body
                  %v2589 = vld [vmem:[%s2587] sm:$0xff]
                  %2590 = vst [vmem:[%s2588] sm:$0xff] %v2589
                  %v2591 = vld [vmem:[%s2587 + $0x8] sm:$0xff]
                  %2592 = vst [vmem:[%s2588 + $0x8] sm:$0xff] %v2591
                  %v2593 = vld [vmem:[%s2587 + $0x10] sm:$0xff]
                  %2594 = vst [vmem:[%s2588 + $0x10] sm:$0xff] %v2593
                  %v2595 = vld [vmem:[%s2587 + $0x18] sm:$0xff]
                  %2596 = vst [vmem:[%s2588 + $0x18] sm:$0xff] %v2595
                  %v2597 = vld [vmem:[%s2587 + $0x20] sm:$0xff]
                  %2598 = vst [vmem:[%s2588 + $0x20] sm:$0xff] %v2597
                  %v2599 = vld [vmem:[%s2587 + $0x28] sm:$0xff]
                  %2600 = vst [vmem:[%s2588 + $0x28] sm:$0xff] %v2599
                  %v2601 = vld [vmem:[%s2587 + $0x30] sm:$0xff]
                  %2602 = vst [vmem:[%s2588 + $0x30] sm:$0xff] %v2601
                  %v2603 = vld [vmem:[%s2587 + $0x38] sm:$0xff]
                  %2604 = vst [vmem:[%s2588 + $0x38] sm:$0xff] %v2603
                  %v2605 = vld [vmem:[%s2587 + $0x40] sm:$0xff]
                  %2606 = vst [vmem:[%s2588 + $0x40] sm:$0xff] %v2605
                  %v2607 = vld [vmem:[%s2587 + $0x48] sm:$0xff]
                  %2608 = vst [vmem:[%s2588 + $0x48] sm:$0xff] %v2607
                  %v2609 = vld [vmem:[%s2587 + $0x50] sm:$0xff]
                  %2610 = vst [vmem:[%s2588 + $0x50] sm:$0xff] %v2609
                  %v2611 = vld [vmem:[%s2587 + $0x58] sm:$0xff]
                  %2612 = vst [vmem:[%s2588 + $0x58] sm:$0xff] %v2611
                  %v2613 = vld [vmem:[%s2587 + $0x60] sm:$0xff]
                  %2614 = vst [vmem:[%s2588 + $0x60] sm:$0xff] %v2613
                  %v2615 = vld [vmem:[%s2587 + $0x68] sm:$0xff]
                  %2616 = vst [vmem:[%s2588 + $0x68] sm:$0xff] %v2615
                  %v2617 = vld [vmem:[%s2587 + $0x70] sm:$0xff]
                  %2618 = vst [vmem:[%s2588 + $0x70] sm:$0xff] %v2617
                  %v2619 = vld [vmem:[%s2587 + $0x78] sm:$0xff]
                  %2620 = vst [vmem:[%s2588 + $0x78] sm:$0xff] %v2619
                  %v2621 = vld [vmem:[%s2587 + $0x80] sm:$0xff]
                  %2622 = vst [vmem:[%s2588 + $0x80] sm:$0xff] %v2621
                  %v2623 = vld [vmem:[%s2587 + $0x88] sm:$0xff]
                  %2624 = vst [vmem:[%s2588 + $0x88] sm:$0xff] %v2623
                  %v2625 = vld [vmem:[%s2587 + $0x90] sm:$0xff]
                  %2626 = vst [vmem:[%s2588 + $0x90] sm:$0xff] %v2625
                  %v2627 = vld [vmem:[%s2587 + $0x98] sm:$0xff]
                  %2628 = vst [vmem:[%s2588 + $0x98] sm:$0xff] %v2627
                  %v2629 = vld [vmem:[%s2587 + $0xa0] sm:$0xff]
                  %2630 = vst [vmem:[%s2588 + $0xa0] sm:$0xff] %v2629
                  %v2631 = vld [vmem:[%s2587 + $0xa8] sm:$0xff]
                  %2632 = vst [vmem:[%s2588 + $0xa8] sm:$0xff] %v2631
                  %v2633 = vld [vmem:[%s2587 + $0xb0] sm:$0xff]
                  %2634 = vst [vmem:[%s2588 + $0xb0] sm:$0xff] %v2633
                  %v2635 = vld [vmem:[%s2587 + $0xb8] sm:$0xff]
                  %2636 = vst [vmem:[%s2588 + $0xb8] sm:$0xff] %v2635
                  %v2637 = vld [vmem:[%s2587 + $0xc0] sm:$0xff]
                  %2638 = vst [vmem:[%s2588 + $0xc0] sm:$0xff] %v2637
                  %v2639 = vld [vmem:[%s2587 + $0xc8] sm:$0xff]
                  %2640 = vst [vmem:[%s2588 + $0xc8] sm:$0xff] %v2639
                  %v2641 = vld [vmem:[%s2587 + $0xd0] sm:$0xff]
                  %2642 = vst [vmem:[%s2588 + $0xd0] sm:$0xff] %v2641
                  %v2643 = vld [vmem:[%s2587 + $0xd8] sm:$0xff]
                  %2644 = vst [vmem:[%s2588 + $0xd8] sm:$0xff] %v2643
                  %v2645 = vld [vmem:[%s2587 + $0xe0] sm:$0xff]
                  %2646 = vst [vmem:[%s2588 + $0xe0] sm:$0xff] %v2645
                  %v2647 = vld [vmem:[%s2587 + $0xe8] sm:$0xff]
                  %2648 = vst [vmem:[%s2588 + $0xe8] sm:$0xff] %v2647
                  %v2649 = vld [vmem:[%s2587 + $0xf0] sm:$0xff]
                  %2650 = vst [vmem:[%s2588 + $0xf0] sm:$0xff] %v2649
                  %v2651 = vld [vmem:[%s2587 + $0xf8] sm:$0xff]
                  %2652 = vst [vmem:[%s2588 + $0xf8] sm:$0xff] %v2651
                  %v2653 = vld [vmem:[%s2587 + $0x100] sm:$0xff]
                  %2654 = vst [vmem:[%s2588 + $0x100] sm:$0xff] %v2653
                  %v2655 = vld [vmem:[%s2587 + $0x108] sm:$0xff]
                  %2656 = vst [vmem:[%s2588 + $0x108] sm:$0xff] %v2655
                  %v2657 = vld [vmem:[%s2587 + $0x110] sm:$0xff]
                  %2658 = vst [vmem:[%s2588 + $0x110] sm:$0xff] %v2657
                  %v2659 = vld [vmem:[%s2587 + $0x118] sm:$0xff]
                  %2660 = vst [vmem:[%s2588 + $0x118] sm:$0xff] %v2659
                  %v2661 = vld [vmem:[%s2587 + $0x120] sm:$0xff]
                  %2662 = vst [vmem:[%s2588 + $0x120] sm:$0xff] %v2661
                  %v2663 = vld [vmem:[%s2587 + $0x128] sm:$0xff]
                  %2664 = vst [vmem:[%s2588 + $0x128] sm:$0xff] %v2663
                  %v2665 = vld [vmem:[%s2587 + $0x130] sm:$0xff]
                  %2666 = vst [vmem:[%s2588 + $0x130] sm:$0xff] %v2665
                  %v2667 = vld [vmem:[%s2587 + $0x138] sm:$0xff]
                  %2668 = vst [vmem:[%s2588 + $0x138] sm:$0xff] %v2667
                  %v2669 = vld [vmem:[%s2587 + $0x140] sm:$0xff]
                  %2670 = vst [vmem:[%s2588 + $0x140] sm:$0xff] %v2669
                  %v2671 = vld [vmem:[%s2587 + $0x148] sm:$0xff]
                  %2672 = vst [vmem:[%s2588 + $0x148] sm:$0xff] %v2671
                  %v2673 = vld [vmem:[%s2587 + $0x150] sm:$0xff]
                  %2674 = vst [vmem:[%s2588 + $0x150] sm:$0xff] %v2673
                  %v2675 = vld [vmem:[%s2587 + $0x158] sm:$0xff]
                  %2676 = vst [vmem:[%s2588 + $0x158] sm:$0xff] %v2675
                  %v2677 = vld [vmem:[%s2587 + $0x160] sm:$0xff]
                  %2678 = vst [vmem:[%s2588 + $0x160] sm:$0xff] %v2677
                  %v2679 = vld [vmem:[%s2587 + $0x168] sm:$0xff]
                  %2680 = vst [vmem:[%s2588 + $0x168] sm:$0xff] %v2679
                  %v2681 = vld [vmem:[%s2587 + $0x170] sm:$0xff]
                  %2682 = vst [vmem:[%s2588 + $0x170] sm:$0xff] %v2681
                  %v2683 = vld [vmem:[%s2587 + $0x178] sm:$0xff]
                  %2684 = vst [vmem:[%s2588 + $0x178] sm:$0xff] %v2683
                  %v2685 = vld [vmem:[%s2587 + $0x180] sm:$0xff]
                  %2686 = vst [vmem:[%s2588 + $0x180] sm:$0xff] %v2685
                  %v2687 = vld [vmem:[%s2587 + $0x188] sm:$0xff]
                  %2688 = vst [vmem:[%s2588 + $0x188] sm:$0xff] %v2687
                  %v2689 = vld [vmem:[%s2587 + $0x190] sm:$0xff]
                  %2690 = vst [vmem:[%s2588 + $0x190] sm:$0xff] %v2689
                  %v2691 = vld [vmem:[%s2587 + $0x198] sm:$0xff]
                  %2692 = vst [vmem:[%s2588 + $0x198] sm:$0xff] %v2691
                  %v2693 = vld [vmem:[%s2587 + $0x1a0] sm:$0xff]
                  %2694 = vst [vmem:[%s2588 + $0x1a0] sm:$0xff] %v2693
                  %v2695 = vld [vmem:[%s2587 + $0x1a8] sm:$0xff]
                  %2696 = vst [vmem:[%s2588 + $0x1a8] sm:$0xff] %v2695
                  %v2697 = vld [vmem:[%s2587 + $0x1b0] sm:$0xff]
                  %2698 = vst [vmem:[%s2588 + $0x1b0] sm:$0xff] %v2697
                  %v2699 = vld [vmem:[%s2587 + $0x1b8] sm:$0xff]
                  %2700 = vst [vmem:[%s2588 + $0x1b8] sm:$0xff] %v2699
                  %v2701 = vld [vmem:[%s2587 + $0x1c0] sm:$0xff]
                  %2702 = vst [vmem:[%s2588 + $0x1c0] sm:$0xff] %v2701
                  %v2703 = vld [vmem:[%s2587 + $0x1c8] sm:$0xff]
                  %2704 = vst [vmem:[%s2588 + $0x1c8] sm:$0xff] %v2703
                  %v2705 = vld [vmem:[%s2587 + $0x1d0] sm:$0xff]
                  %2706 = vst [vmem:[%s2588 + $0x1d0] sm:$0xff] %v2705
                  %v2707 = vld [vmem:[%s2587 + $0x1d8] sm:$0xff]
                  %2708 = vst [vmem:[%s2588 + $0x1d8] sm:$0xff] %v2707
                  %v2709 = vld [vmem:[%s2587 + $0x1e0] sm:$0xff]
                  %2710 = vst [vmem:[%s2588 + $0x1e0] sm:$0xff] %v2709
                  %v2711 = vld [vmem:[%s2587 + $0x1e8] sm:$0xff]
                  %2712 = vst [vmem:[%s2588 + $0x1e8] sm:$0xff] %v2711
                  %v2713 = vld [vmem:[%s2587 + $0x1f0] sm:$0xff]
                  %2714 = vst [vmem:[%s2588 + $0x1f0] sm:$0xff] %v2713
                  %s2715 = sadd.s32 1, %s2586
                  %p2716 = scmp.ge.s32.totalorder %s2715, %s2578
                  %s2717 = scalar_select %p2716, 0, %s2715
                  %s2718 = smul.u32 %s2717, 504
                  %s2719 = smul.u32 %s2717, 504
                  %s2720 = scalar_lea.vmem %s2387, %s2718 [#allocation4]
                  %s2721 = scalar_lea.vmem %s2398, %s2719
                $region103: #{tpu_custom_call.1} parent=97 // loop_footer
                  %s2583 = sadd.s32 %s2581, 1
                $region104: #{tpu_custom_call.1} parent=97 // loop_footer_branch
                  %2580 = sbr.rel target = $region100
                $region105: #{tpu_custom_call.1} parent=97 // loop_exit
                  _
                %s2722 = sdiv.u32.pop %s2394, 63
                %s2723 = srem.u32.pop %s2394, 63
                %s2724 = smul.u32 %s2722, 63
                %s2725 = smul.u32 8, %s2724
                %s2726 = scalar_lea.vmem %s2387, %s2725 [#allocation4]
                %s2727 = smul.u32 8, %s2724
                %s2728 = scalar_lea.vmem %s2398, %s2727
                // While loop
                $region106: #{tpu_custom_call.1} parent=97 // loop_pre_header
                  _
                $region107: #{tpu_custom_call.1} parent=97 // loop_header
                  %s2730 = sphi 0, %s2732
                  %p2731 = scmp.ge.s32.totalorder %s2730, %s2723
                  %s2735 = sphi 0, %s2742
                  %s2736 = sphi %s2726, %s2745
                  %s2737 = sphi %s2728, %s2746
                $region108: #{tpu_custom_call.1} parent=97 // loop_header_branch
                  %2734 = sbr.rel (%p2731) target = $region112
                $region109: #{tpu_custom_call.1} parent=97 // loop_body
                  %v2738 = vld [vmem:[%s2736] sm:$0xff]
                  %2739 = vst [vmem:[%s2737] sm:$0xff] %v2738
                  %s2740 = sadd.s32 1, %s2735
                  %p2741 = scmp.ge.s32.totalorder %s2740, %s2723
                  %s2742 = scalar_select %p2741, 0, %s2740
                  %s2743 = smul.u32 %s2742, 8
                  %s2744 = smul.u32 %s2742, 8
                  %s2745 = scalar_lea.vmem %s2726, %s2743 [#allocation4]
                  %s2746 = scalar_lea.vmem %s2728, %s2744
                $region110: #{tpu_custom_call.1} parent=97 // loop_footer
                  %s2732 = sadd.s32 %s2730, 1
                $region111: #{tpu_custom_call.1} parent=97 // loop_footer_branch
                  %2729 = sbr.rel target = $region107
                $region112: #{tpu_custom_call.1} parent=97 // loop_exit
                  _
              $region98: #{tpu_custom_call.1} parent=75 // pred_fallthru
                _
              // Predicated region
              $region113: #{tpu_custom_call.1} parent=75 // pred_check
                _
              $region114: #{tpu_custom_call.1} parent=75 // pred_check_branch
                %2748 = sbr.rel target = $region116
              $region115: #{tpu_custom_call.1} parent=75 // pred_region
                _
              $region116: #{tpu_custom_call.1} parent=75 // pred_fallthru
                _
            $region76: #{tpu_custom_call.1} parent=71 // pred_fallthru
              _
            // Predicated region
            $region77: #{tpu_custom_call.1} parent=71 // pred_check
              _
            $region78: #{tpu_custom_call.1} parent=71 // pred_check_branch
              %2405 = sbr.rel target = $region80
            $region79: #{tpu_custom_call.1} parent=71 // pred_region
              %s2407 = sdiv.u32.pop %s2394, 63
              %s2408 = srem.u32.pop %s2394, 63
              // While loop
              $region81: #{tpu_custom_call.1} parent=79 // loop_pre_header
                _
              $region82: #{tpu_custom_call.1} parent=79 // loop_header
                %s2410 = sphi 0, %s2412
                %p2411 = scmp.ge.s32.totalorder %s2410, %s2407
                %s2415 = sphi 0, %s2546
                %s2416 = sphi %s2387, %s2549
                %s2417 = sphi %s2398, %s2550
              $region83: #{tpu_custom_call.1} parent=79 // loop_header_branch
                %2414 = sbr.rel (%p2411) target = $region87
              $region84: #{tpu_custom_call.1} parent=79 // loop_body
                %v2418 = vld [vmem:[%s2416] sm:$0xff]
                %2419 = vst [vmem:[%s2417] sm:$0xff] %v2418
                %v2420 = vld [vmem:[%s2416 + $0x8] sm:$0xff]
                %2421 = vst [vmem:[%s2417 + $0x8] sm:$0xff] %v2420
                %v2422 = vld [vmem:[%s2416 + $0x10] sm:$0xff]
                %2423 = vst [vmem:[%s2417 + $0x10] sm:$0xff] %v2422
                %v2424 = vld [vmem:[%s2416 + $0x18] sm:$0xff]
                %2425 = vst [vmem:[%s2417 + $0x18] sm:$0xff] %v2424
                %v2426 = vld [vmem:[%s2416 + $0x20] sm:$0xff]
                %2427 = vst [vmem:[%s2417 + $0x20] sm:$0xff] %v2426
                %v2428 = vld [vmem:[%s2416 + $0x28] sm:$0xff]
                %2429 = vst [vmem:[%s2417 + $0x28] sm:$0xff] %v2428
                %v2430 = vld [vmem:[%s2416 + $0x30] sm:$0xff]
                %2431 = vst [vmem:[%s2417 + $0x30] sm:$0xff] %v2430
                %v2432 = vld [vmem:[%s2416 + $0x38] sm:$0xff]
                %2433 = vst [vmem:[%s2417 + $0x38] sm:$0xff] %v2432
                %v2434 = vld [vmem:[%s2416 + $0x40] sm:$0xff]
                %2435 = vst [vmem:[%s2417 + $0x40] sm:$0xff] %v2434
                %v2436 = vld [vmem:[%s2416 + $0x48] sm:$0xff]
                %2437 = vst [vmem:[%s2417 + $0x48] sm:$0xff] %v2436
                %v2438 = vld [vmem:[%s2416 + $0x50] sm:$0xff]
                %2439 = vst [vmem:[%s2417 + $0x50] sm:$0xff] %v2438
                %v2440 = vld [vmem:[%s2416 + $0x58] sm:$0xff]
                %2441 = vst [vmem:[%s2417 + $0x58] sm:$0xff] %v2440
                %v2442 = vld [vmem:[%s2416 + $0x60] sm:$0xff]
                %2443 = vst [vmem:[%s2417 + $0x60] sm:$0xff] %v2442
                %v2444 = vld [vmem:[%s2416 + $0x68] sm:$0xff]
                %2445 = vst [vmem:[%s2417 + $0x68] sm:$0xff] %v2444
                %v2446 = vld [vmem:[%s2416 + $0x70] sm:$0xff]
                %2447 = vst [vmem:[%s2417 + $0x70] sm:$0xff] %v2446
                %v2448 = vld [vmem:[%s2416 + $0x78] sm:$0xff]
                %2449 = vst [vmem:[%s2417 + $0x78] sm:$0xff] %v2448
                %v2450 = vld [vmem:[%s2416 + $0x80] sm:$0xff]
                %2451 = vst [vmem:[%s2417 + $0x80] sm:$0xff] %v2450
                %v2452 = vld [vmem:[%s2416 + $0x88] sm:$0xff]
                %2453 = vst [vmem:[%s2417 + $0x88] sm:$0xff] %v2452
                %v2454 = vld [vmem:[%s2416 + $0x90] sm:$0xff]
                %2455 = vst [vmem:[%s2417 + $0x90] sm:$0xff] %v2454
                %v2456 = vld [vmem:[%s2416 + $0x98] sm:$0xff]
                %2457 = vst [vmem:[%s2417 + $0x98] sm:$0xff] %v2456
                %v2458 = vld [vmem:[%s2416 + $0xa0] sm:$0xff]
                %2459 = vst [vmem:[%s2417 + $0xa0] sm:$0xff] %v2458
                %v2460 = vld [vmem:[%s2416 + $0xa8] sm:$0xff]
                %2461 = vst [vmem:[%s2417 + $0xa8] sm:$0xff] %v2460
                %v2462 = vld [vmem:[%s2416 + $0xb0] sm:$0xff]
                %2463 = vst [vmem:[%s2417 + $0xb0] sm:$0xff] %v2462
                %v2464 = vld [vmem:[%s2416 + $0xb8] sm:$0xff]
                %2465 = vst [vmem:[%s2417 + $0xb8] sm:$0xff] %v2464
                %v2466 = vld [vmem:[%s2416 + $0xc0] sm:$0xff]
                %2467 = vst [vmem:[%s2417 + $0xc0] sm:$0xff] %v2466
                %v2468 = vld [vmem:[%s2416 + $0xc8] sm:$0xff]
                %2469 = vst [vmem:[%s2417 + $0xc8] sm:$0xff] %v2468
                %v2470 = vld [vmem:[%s2416 + $0xd0] sm:$0xff]
                %2471 = vst [vmem:[%s2417 + $0xd0] sm:$0xff] %v2470
                %v2472 = vld [vmem:[%s2416 + $0xd8] sm:$0xff]
                %2473 = vst [vmem:[%s2417 + $0xd8] sm:$0xff] %v2472
                %v2474 = vld [vmem:[%s2416 + $0xe0] sm:$0xff]
                %2475 = vst [vmem:[%s2417 + $0xe0] sm:$0xff] %v2474
                %v2476 = vld [vmem:[%s2416 + $0xe8] sm:$0xff]
                %2477 = vst [vmem:[%s2417 + $0xe8] sm:$0xff] %v2476
                %v2478 = vld [vmem:[%s2416 + $0xf0] sm:$0xff]
                %2479 = vst [vmem:[%s2417 + $0xf0] sm:$0xff] %v2478
                %v2480 = vld [vmem:[%s2416 + $0xf8] sm:$0xff]
                %2481 = vst [vmem:[%s2417 + $0xf8] sm:$0xff] %v2480
                %v2482 = vld [vmem:[%s2416 + $0x100] sm:$0xff]
                %2483 = vst [vmem:[%s2417 + $0x100] sm:$0xff] %v2482
                %v2484 = vld [vmem:[%s2416 + $0x108] sm:$0xff]
                %2485 = vst [vmem:[%s2417 + $0x108] sm:$0xff] %v2484
                %v2486 = vld [vmem:[%s2416 + $0x110] sm:$0xff]
                %2487 = vst [vmem:[%s2417 + $0x110] sm:$0xff] %v2486
                %v2488 = vld [vmem:[%s2416 + $0x118] sm:$0xff]
                %2489 = vst [vmem:[%s2417 + $0x118] sm:$0xff] %v2488
                %v2490 = vld [vmem:[%s2416 + $0x120] sm:$0xff]
                %2491 = vst [vmem:[%s2417 + $0x120] sm:$0xff] %v2490
                %v2492 = vld [vmem:[%s2416 + $0x128] sm:$0xff]
                %2493 = vst [vmem:[%s2417 + $0x128] sm:$0xff] %v2492
                %v2494 = vld [vmem:[%s2416 + $0x130] sm:$0xff]
                %2495 = vst [vmem:[%s2417 + $0x130] sm:$0xff] %v2494
                %v2496 = vld [vmem:[%s2416 + $0x138] sm:$0xff]
                %2497 = vst [vmem:[%s2417 + $0x138] sm:$0xff] %v2496
                %v2498 = vld [vmem:[%s2416 + $0x140] sm:$0xff]
                %2499 = vst [vmem:[%s2417 + $0x140] sm:$0xff] %v2498
                %v2500 = vld [vmem:[%s2416 + $0x148] sm:$0xff]
                %2501 = vst [vmem:[%s2417 + $0x148] sm:$0xff] %v2500
                %v2502 = vld [vmem:[%s2416 + $0x150] sm:$0xff]
                %2503 = vst [vmem:[%s2417 + $0x150] sm:$0xff] %v2502
                %v2504 = vld [vmem:[%s2416 + $0x158] sm:$0xff]
                %2505 = vst [vmem:[%s2417 + $0x158] sm:$0xff] %v2504
                %v2506 = vld [vmem:[%s2416 + $0x160] sm:$0xff]
                %2507 = vst [vmem:[%s2417 + $0x160] sm:$0xff] %v2506
                %v2508 = vld [vmem:[%s2416 + $0x168] sm:$0xff]
                %2509 = vst [vmem:[%s2417 + $0x168] sm:$0xff] %v2508
                %v2510 = vld [vmem:[%s2416 + $0x170] sm:$0xff]
                %2511 = vst [vmem:[%s2417 + $0x170] sm:$0xff] %v2510
                %v2512 = vld [vmem:[%s2416 + $0x178] sm:$0xff]
                %2513 = vst [vmem:[%s2417 + $0x178] sm:$0xff] %v2512
                %v2514 = vld [vmem:[%s2416 + $0x180] sm:$0xff]
                %2515 = vst [vmem:[%s2417 + $0x180] sm:$0xff] %v2514
                %v2516 = vld [vmem:[%s2416 + $0x188] sm:$0xff]
                %2517 = vst [vmem:[%s2417 + $0x188] sm:$0xff] %v2516
                %v2518 = vld [vmem:[%s2416 + $0x190] sm:$0xff]
                %2519 = vst [vmem:[%s2417 + $0x190] sm:$0xff] %v2518
                %v2520 = vld [vmem:[%s2416 + $0x198] sm:$0xff]
                %2521 = vst [vmem:[%s2417 + $0x198] sm:$0xff] %v2520
                %v2522 = vld [vmem:[%s2416 + $0x1a0] sm:$0xff]
                %2523 = vst [vmem:[%s2417 + $0x1a0] sm:$0xff] %v2522
                %v2524 = vld [vmem:[%s2416 + $0x1a8] sm:$0xff]
                %2525 = vst [vmem:[%s2417 + $0x1a8] sm:$0xff] %v2524
                %v2526 = vld [vmem:[%s2416 + $0x1b0] sm:$0xff]
                %2527 = vst [vmem:[%s2417 + $0x1b0] sm:$0xff] %v2526
                %v2528 = vld [vmem:[%s2416 + $0x1b8] sm:$0xff]
                %2529 = vst [vmem:[%s2417 + $0x1b8] sm:$0xff] %v2528
                %v2530 = vld [vmem:[%s2416 + $0x1c0] sm:$0xff]
                %2531 = vst [vmem:[%s2417 + $0x1c0] sm:$0xff] %v2530
                %v2532 = vld [vmem:[%s2416 + $0x1c8] sm:$0xff]
                %2533 = vst [vmem:[%s2417 + $0x1c8] sm:$0xff] %v2532
                %v2534 = vld [vmem:[%s2416 + $0x1d0] sm:$0xff]
                %2535 = vst [vmem:[%s2417 + $0x1d0] sm:$0xff] %v2534
                %v2536 = vld [vmem:[%s2416 + $0x1d8] sm:$0xff]
                %2537 = vst [vmem:[%s2417 + $0x1d8] sm:$0xff] %v2536
                %v2538 = vld [vmem:[%s2416 + $0x1e0] sm:$0xff]
                %2539 = vst [vmem:[%s2417 + $0x1e0] sm:$0xff] %v2538
                %v2540 = vld [vmem:[%s2416 + $0x1e8] sm:$0xff]
                %2541 = vst [vmem:[%s2417 + $0x1e8] sm:$0xff] %v2540
                %v2542 = vld [vmem:[%s2416 + $0x1f0] sm:$0xff]
                %2543 = vst [vmem:[%s2417 + $0x1f0] sm:$0xff] %v2542
                %s2544 = sadd.s32 1, %s2415
                %p2545 = scmp.ge.s32.totalorder %s2544, %s2407
                %s2546 = scalar_select %p2545, 0, %s2544
                %s2547 = smul.u32 %s2546, 504
                %s2548 = smul.u32 %s2546, 504
                %s2549 = scalar_lea.vmem %s2387, %s2547 [#allocation4]
                %s2550 = scalar_lea.vmem %s2398, %s2548
              $region85: #{tpu_custom_call.1} parent=79 // loop_footer
                %s2412 = sadd.s32 %s2410, 1
              $region86: #{tpu_custom_call.1} parent=79 // loop_footer_branch
                %2409 = sbr.rel target = $region82
              $region87: #{tpu_custom_call.1} parent=79 // loop_exit
                _
              %s2551 = sdiv.u32.pop %s2394, 63
              %s2552 = srem.u32.pop %s2394, 63
              %s2553 = smul.u32 %s2551, 63
              %s2554 = smul.u32 8, %s2553
              %s2555 = scalar_lea.vmem %s2387, %s2554 [#allocation4]
              %s2556 = smul.u32 8, %s2553
              %s2557 = scalar_lea.vmem %s2398, %s2556
              // While loop
              $region88: #{tpu_custom_call.1} parent=79 // loop_pre_header
                _
              $region89: #{tpu_custom_call.1} parent=79 // loop_header
                %s2559 = sphi 0, %s2561
                %p2560 = scmp.ge.s32.totalorder %s2559, %s2552
                %s2564 = sphi 0, %s2571
                %s2565 = sphi %s2555, %s2574
                %s2566 = sphi %s2557, %s2575
              $region90: #{tpu_custom_call.1} parent=79 // loop_header_branch
                %2563 = sbr.rel (%p2560) target = $region94
              $region91: #{tpu_custom_call.1} parent=79 // loop_body
                %v2567 = vld [vmem:[%s2565] sm:$0xff]
                %2568 = vst [vmem:[%s2566] sm:$0xff] %v2567
                %s2569 = sadd.s32 1, %s2564
                %p2570 = scmp.ge.s32.totalorder %s2569, %s2552
                %s2571 = scalar_select %p2570, 0, %s2569
                %s2572 = smul.u32 %s2571, 8
                %s2573 = smul.u32 %s2571, 8
                %s2574 = scalar_lea.vmem %s2555, %s2572 [#allocation4]
                %s2575 = scalar_lea.vmem %s2557, %s2573
              $region92: #{tpu_custom_call.1} parent=79 // loop_footer
                %s2561 = sadd.s32 %s2559, 1
              $region93: #{tpu_custom_call.1} parent=79 // loop_footer_branch
                %2558 = sbr.rel target = $region89
              $region94: #{tpu_custom_call.1} parent=79 // loop_exit
                _
            $region80: #{tpu_custom_call.1} parent=71 // pred_fallthru
              _
          $region72: #{tpu_custom_call.1} parent=67 // pred_fallthru
            _
          %2749 = vnop
        $region68: #{tpu_custom_call.1} parent=59 // pred_fallthru
          _
      $region60: #{tpu_custom_call.1} parent=5 // pred_fallthru
        _
      %p2750 = scmp.le.s32.totalorder 2, %s17
      // Predicated region
      $region117: #{tpu_custom_call.1} parent=5 // pred_check
        %p2751 = pneg %p2750
      $region118: #{tpu_custom_call.1} parent=5 // pred_check_branch
        %2753 = sbr.rel (%p2751) target = $region120
      $region119: #{tpu_custom_call.1} parent=5 // pred_region
        %s2754 = ssub.s32 %s17, 2
        // Predicated region
        $region121: #{tpu_custom_call.1} parent=119 // pred_check
          %p2755 = pneg %p266
        $region122: #{tpu_custom_call.1} parent=119 // pred_check_branch
          %2757 = sbr.rel (%p2755) target = $region124
        $region123: #{tpu_custom_call.1} parent=119 // pred_region
          %s2758 = sand.u32 %s251, 1
          %s2759 = sand.u32 %s251, 1
          %s2760 = smul.addr %s2759, 504
          %s2761 = scalar_lea.vmem [#allocation4], %s2760
        $region124: #{tpu_custom_call.1} parent=119 // pred_fallthru
          _
      $region120: #{tpu_custom_call.1} parent=5 // pred_fallthru
        _
    $region6: #{tpu_custom_call.1} parent=1 // loop_footer
      %s21 = sadd.s32 1, %s17
    $region7: #{tpu_custom_call.1} parent=1 // loop_footer_branch
      %16 = sbr.rel target = $region3
    $region8: #{tpu_custom_call.1} parent=1 // loop_exit
      _
    %2762 = vsyncpa [#allocation3], 1
    %s2763 = scalar_lea.sflag [#allocation3], 1
    %2764 = vsyncpa %s2763, 1

</llo_original>
